<compile_context>
chip_gen: v6e
topology: v6e:2x2x1
jax: 0.10.0
libtpu: 0.0.40
codegen_flags: <defaults>
</compile_context>

<pallas_src>
import functools

import jax
import jax.numpy as jnp
from jax.experimental import pallas as pl
from jax.experimental.pallas import tpu as pltpu

LANES = 128
SMALL_INPUT_BYTES = 128 * 1024  # below this, a fused pure-jnp path is faster


def _sublane_granule(dtype) -> int:
    """Sublane packing granule for a dtype (rows per vreg)."""
    itemsize = jnp.dtype(dtype).itemsize
    if itemsize >= 4:
        return 8
    if itemsize == 2:
        return 16
    return 32


def _chip_plan():
    """Returns (num_tensorcores, target_block_bytes, vmem_limit_bytes|None)."""
    kind = ""
    try:
        kind = (getattr(jax.devices()[0], "device_kind", "") or "").lower()
    except Exception:  # pragma: no cover - defensive
        pass
    if "v7" in kind:
        # 2 TensorCores per chip, only 64 MiB physical VMEM per TC.
        return 2, 4 * 1024 * 1024, 48 * 1024 * 1024
    if "v5" in kind or "v6" in kind:
        # Single TensorCore, 128 MiB physical VMEM; raise the scoped default
        # (16 / 32 MiB) so 2 inputs x 2 pipeline buffers x 4 MiB blocks fit.
        return 1, 4 * 1024 * 1024, 64 * 1024 * 1024
    # Unknown / older generation: conservative tiles, default scoped VMEM.
    return 1, 1 * 1024 * 1024, None


def _charbonnier_sum_jnp(x_flat, y_flat, eps):
    d = x_flat.astype(jnp.float32) - y_flat.astype(jnp.float32)
    return jnp.sum(jnp.sqrt(d * d + jnp.float32(eps)))


def _charbonnier_sum_kernel(x_ref, y_ref, out_ref, *, eps):
    """Accumulate sum(sqrt((x-y)^2 + eps)) into a resident (1, 1, 128) block.

    Grid is (num_cores, steps); axis 1 is the reduction axis, so out_ref stays
    resident across it.  The per-step sublane reduction keeps the accumulator
    one lane-row per core; the hot loop is vld + VPU sub/mul/add + EUP sqrt +
    an XLU sublane reduce — no large stores, no masking.
    """
    j = pl.program_id(1)

    @pl.when(j == 0)
    def _():
        out_ref[...] = jnp.zeros_like(out_ref)

    xd = x_ref[...].astype(jnp.float32)
    yd = y_ref[...].astype(jnp.float32)
    d = xd - yd
    # eps is a Python float -> folded as a literal (no captured constants).
    s = jnp.sqrt(d * d + eps)                          # (block_rows, 128)
    out_ref[0] += jnp.sum(s, axis=0, keepdims=True)    # (1, 128) lane partials


def charbonnier_loss(x, y, eps=1e-6):
    assert x.shape == y.shape, (x.shape, y.shape)
    eps = float(eps)
    total = int(x.size)
    itemsize = jnp.dtype(x.dtype).itemsize
    granule = _sublane_granule(x.dtype)

    xf = x.reshape(-1)
    yf = y.reshape(-1)

    rows_full = total // LANES                     # complete 128-lane rows
    rows_g = (rows_full // granule) * granule      # sublane-aligned rows

    # Fast path: tiny tensors — a single fused XLA sub/square/sqrt/sum beats
    # kernel dispatch + grid setup + a separate tail reduction.
    if total * itemsize < SMALL_INPUT_BYTES or rows_g < granule:
        return _charbonnier_sum_jnp(xf, yf, eps) / jnp.float32(total)

    num_cores, target_block_bytes, vmem_limit_bytes = _chip_plan()

    # ---- Tile plan: ~target_block_bytes per input block, dtype-aware. ------
    budget_rows = max(
        granule, (target_block_bytes // (LANES * itemsize)) // granule * granule
    )

    if num_cores > 1:
        # Give each core a contiguous, granule-aligned share of the rows so the
        # block count is always a multiple of num_cores (no 1-core fallback).
        rows_per_core = (rows_g // (num_cores * granule)) * granule
        if rows_per_core < granule:
            num_cores = 1
    if num_cores == 1:
        rows_per_core = rows_g

    steps = max(1, -(-rows_per_core // budget_rows))  # ceil divide
    block_rows = max(granule, (rows_per_core // steps) // granule * granule)
    steps = rows_per_core // block_rows
    num_blocks = num_cores * steps
    bulk_rows = num_blocks * block_rows               # rows handled in-kernel
    tail_start = bulk_rows * LANES                    # first element left to jnp

    if total % LANES == 0:
        # Zero-copy reshape; the grid only touches the first bulk_rows rows.
        x2 = xf.reshape(rows_full, LANES)
        y2 = yf.reshape(rows_full, LANES)
    else:
        # Ragged total: lane-aligned prefix for the kernel, remainder -> tail.
        x2 = xf[:tail_start].reshape(bulk_rows, LANES)
        y2 = yf[:tail_start].reshape(bulk_rows, LANES)

    in_spec = pl.BlockSpec(
        (block_rows, LANES), lambda c, j, s=steps: (c * s + j, 0)
    )

    if num_cores > 1:
        dim_sems = (
            getattr(pltpu, "CORE_PARALLEL", "parallel"),
            getattr(pltpu, "ARBITRARY", "arbitrary"),
        )
    else:
        dim_sems = ("parallel", "arbitrary")

    cp_kwargs = dict(dimension_semantics=dim_sems)
    if vmem_limit_bytes is not None:
        cp_kwargs["vmem_limit_bytes"] = vmem_limit_bytes

    partials = pl.pallas_call(
        functools.partial(_charbonnier_sum_kernel, eps=eps),
        out_shape=jax.ShapeDtypeStruct((num_cores, 1, LANES), jnp.float32),
        grid_spec=pltpu.PrefetchScalarGridSpec(
            num_scalar_prefetch=0,
            grid=(num_cores, steps),
            in_specs=[in_spec, in_spec],
            out_specs=pl.BlockSpec((1, 1, LANES), lambda c, j: (c, 0, 0)),
        ),
        compiler_params=pltpu.CompilerParams(**cp_kwargs),
    )(x2, y2)

    # Final cross-lane reduction is over at most num_cores * 128 floats.
    kernel_sum = jnp.sum(partials)

    # Ragged tail: < (a few granules of rows) + a <128-element remainder.
    tail_sum = jnp.float32(0.0)
    if tail_start < total:
        tail_sum = _charbonnier_sum_jnp(xf[tail_start:], yf[tail_start:], eps)

    return (kernel_sum + tail_sum) / jnp.float32(total)


if __name__ == "__main__":
    key = jax.random.PRNGKey(0)

    def ref_loss(x, y, eps):
        d = x.astype(jnp.float32) - y.astype(jnp.float32)
        return jnp.mean(jnp.sqrt(d * d + jnp.float32(eps)))

    # 1) main Pallas-kernel path, 2) ragged size (kernel + jnp tail),
    # 3) tiny input (pure-jnp fast path), 4) bf16 (dtype-aware tiling).
    cases = [
        ("f32 kernel path", (2, 4, 128, 128), jnp.float32),
        ("f32 ragged tail", (2, 3, 151, 149), jnp.float32),
        ("f32 tiny fast path", (2, 4, 16, 16), jnp.float32),
        ("bf16 kernel path", (2, 4, 128, 128), jnp.bfloat16),
    ]

    for name, shape, dtype in cases:
        key, kx, ky = jax.random.split(key, 3)
        x = jax.random.normal(kx, shape, dtype=jnp.float32).astype(dtype)
        y = jax.random.normal(ky, shape, dtype=jnp.float32).astype(dtype)

        loss = charbonnier_loss(x, y, eps=1e-6)
        jax.block_until_ready(loss)

        ref = ref_loss(x, y, 1e-6)
        assert jnp.allclose(loss, ref, rtol=1e-3, atol=1e-5), (name, loss, ref)

    print("KERNEL_OK")
</pallas_src>

<mosaic_0001>
module attributes {stable_mosaic.version = 11 : i64} {
  func.func @_charbonnier_sum_kernel(%arg0: i32, %arg1: i32, %arg2: memref<1024x128xf32, #tpu.memory_space<vmem>>, %arg3: memref<1024x128xf32, #tpu.memory_space<vmem>>, %arg4: memref<1x1x128xf32, #tpu.memory_space<vmem>>) attributes {dimension_semantics = [#tpu.dimension_semantics<parallel>, #tpu.dimension_semantics<arbitrary>], iteration_bounds = array<i64: 1, 1>, scalar_prefetch = 0 : i64, scratch_operands = 0 : i64, tpu.core_type = #tpu.core_type<tc>, window_params = [{transform_indices = @transform_0, window_bounds = array<i64: 1024, 128>}, {transform_indices = @transform_1, window_bounds = array<i64: 1024, 128>}, {transform_indices = @transform_2, window_bounds = array<i64: 1, 1, 128>}]} {
    %c0_i32 = arith.constant 0 : i32
    %0 = arith.cmpi eq, %arg1, %c0_i32 : i32
    %1 = arith.extui %0 : i1 to i32
    %c0_i32_0 = arith.constant 0 : i32
    %2 = arith.cmpi ne, %1, %c0_i32_0 : i32
    scf.if %2 {
      %cst_11 = arith.constant 0.000000e+00 : f32
      %18 = vector.broadcast %cst_11 : f32 to vector<1x1x128xf32>
      %c0_12 = arith.constant 0 : index
      %c0_13 = arith.constant 0 : index
      %c0_14 = arith.constant 0 : index
      %19 = vector.load %arg4[%c0_12, %c0_13, %c0_14] : memref<1x1x128xf32, #tpu.memory_space<vmem>>, vector<1x1x128xf32>
      tpu.vector_store %arg4[%c0_12, %c0_13, %c0_14], %18 {strides = array<i32>} : memref<1x1x128xf32, #tpu.memory_space<vmem>>, vector<1x1x128xf32>,
    } else {
    }
    %c0 = arith.constant 0 : index
    %c0_1 = arith.constant 0 : index
    %3 = vector.load %arg2[%c0, %c0_1] : memref<1024x128xf32, #tpu.memory_space<vmem>>, vector<1024x128xf32>
    %c0_2 = arith.constant 0 : index
    %c0_3 = arith.constant 0 : index
    %4 = vector.load %arg3[%c0_2, %c0_3] : memref<1024x128xf32, #tpu.memory_space<vmem>>, vector<1024x128xf32>
    %5 = arith.subf %3, %4 : vector<1024x128xf32>
    %6 = arith.mulf %5, %5 : vector<1024x128xf32>
    %cst = arith.constant 9.99999997E-7 : f32
    %7 = vector.broadcast %cst : f32 to vector<1024x128xf32>
    %8 = arith.addf %6, %7 : vector<1024x128xf32>
    %9 = math.sqrt %8 : vector<1024x128xf32>
    %c0_4 = arith.constant 0 : index
    %c0_5 = arith.constant 0 : index
    %c0_6 = arith.constant 0 : index
    %10 = vector.load %arg4[%c0_4, %c0_5, %c0_6] : memref<1x1x128xf32, #tpu.memory_space<vmem>>, vector<1x1x128xf32>
    %11 = vector.shape_cast %10 : vector<1x1x128xf32> to vector<1x128xf32>
    %cst_7 = arith.constant dense<0.000000e+00> : vector<128xf32>
    %12 = vector.multi_reduction <add>, %9, %cst_7 [0] : vector<1024x128xf32> to vector<128xf32>
    %13 = vector.shape_cast %12 : vector<128xf32> to vector<1x128xf32>
    %14 = arith.addf %11, %13 : vector<1x128xf32>
    %c0_8 = arith.constant 0 : index
    %c0_9 = arith.constant 0 : index
    %c0_10 = arith.constant 0 : index
    %15 = vector.load %arg4[%c0_8, %c0_9, %c0_10] : memref<1x1x128xf32, #tpu.memory_space<vmem>>, vector<1x1x128xf32>
    %16 = vector.shape_cast %15 : vector<1x1x128xf32> to vector<1x128xf32>
    %17 = vector.shape_cast %14 : vector<1x128xf32> to vector<1x1x128xf32>
    tpu.vector_store %arg4[%c0_8, %c0_9, %c0_10], %17 {strides = array<i32>} : memref<1x1x128xf32, #tpu.memory_space<vmem>>, vector<1x1x128xf32>,
    return
  }
  func.func @transform_0(%arg0: i32, %arg1: i32) -> (i32, i32) {
    %c1_i32 = arith.constant 1 : i32
    %0 = arith.muli %arg0, %c1_i32 : i32
    %1 = arith.addi %0, %arg1 : i32
    %c0_i32 = arith.constant 0 : i32
    %c0_i32_0 = arith.constant 0 : i32
    return %1, %c0_i32 : i32, i32
  }
  func.func @transform_1(%arg0: i32, %arg1: i32) -> (i32, i32) {
    %c1_i32 = arith.constant 1 : i32
    %0 = arith.muli %arg0, %c1_i32 : i32
    %1 = arith.addi %0, %arg1 : i32
    %c0_i32 = arith.constant 0 : i32
    %c0_i32_0 = arith.constant 0 : i32
    return %1, %c0_i32 : i32, i32
  }
  func.func @transform_2(%arg0: i32, %arg1: i32) -> (i32, i32, i32) {
    %c0_i32 = arith.constant 0 : i32
    %c0_i32_0 = arith.constant 0 : i32
    %c0_i32_1 = arith.constant 0 : i32
    return %arg0, %c0_i32, %c0_i32_0 : i32, i32, i32
  }
}

</mosaic_0001>

<llo_original>
// kernel: tpu_custom_call.1
$region0: #{tpu_custom_call.1}
  #allocation0 [shape = 'u32[]', space=smem, size = 0x4, offset = 0x4, fixed_abs, tag = 'smem constant byte address 0x4 - core index']
  #allocation1 [shape = 'u32[144,128]{1,0:T(1,128)}', space=vmem, size = 0x12000, scoped, tag = 'internal scratch']
  %s0 = inlined_call_operand.hbm [shape: f32[1024,128], index: 0, kind: input, shape index: {}]
  %s1 = inlined_call_operand.hbm [shape: f32[1024,128], index: 1, kind: input, shape index: {}]
  %s2 = inlined_call_operand.hbm [shape: f32[1,1,128], index: 2, kind: output, shape index: {}]
  %s3 = sld [smem:[#allocation0]]
  $region30: #{tpu_custom_call.1} parent=0
    _
  %s5 = ssub.s32 1, %s3
  %s6 = scalar_select 0, %s5, %s3
  $region1: #{tpu_custom_call.1} parent=0
    #allocation2 [shape = 'u8[524288]{0}', space=vmem, size = 0x80000, scoped, tag = 'input window, operand 0, single buffered']
    #allocation3 [shape = 's32[1]{0}', space=sflag, size = 0x4, scoped, tag = 'scoped memory for tpu_custom_call.1']
    #allocation4 [shape = 's32[1]{0}', space=sflag, size = 0x4, scoped, tag = 'scoped memory for tpu_custom_call.1']
    #allocation5 [shape = 'u8[524288]{0}', space=vmem, size = 0x80000, scoped, tag = 'input window, operand 1, single buffered']
    #allocation6 [shape = 's32[1]{0}', space=sflag, size = 0x4, scoped, tag = 'scoped memory for tpu_custom_call.1']
    #allocation7 [shape = 'u8[512]{0}', space=vmem, size = 0x400, scoped, tag = 'output window, operand 0, single buffered']
    %7 = vsyncpa [#allocation3], 0
    %8 = vsyncpa [#allocation6], 0
    %9 = vsyncpa [#allocation4], 0
    // Predicated region
    $region2: #{tpu_custom_call.1} parent=1 // pred_check
      _
    $region3: #{tpu_custom_call.1} parent=1 // pred_check_branch
      %11 = sbr.rel (0) target = $region5
    $region4: #{tpu_custom_call.1} parent=1 // pred_region
      %s12 = sadd.s32 0, 0
      %s13 = smul.u32 128, %s12
      %s15 = ssub.s32 16384, 16384
      %16 = vsyncadd [#allocation3], %s15
      %s17 = smul.addr %s13, 128
      %s18 = scalar_lea.hbm %s0, %s17
      %s19 = sshll.u32 [#allocation2], 4
      %s20 = int_to_ptr.vmem [resolvable:$true] %s19
      %25 = dma.hbm_to_vmem [thread:$0]  %s18, 16384, %s20, [#allocation3], 128, 128, 8
    $region5: #{tpu_custom_call.1} parent=1 // pred_fallthru
      _
    // Predicated region
    $region6: #{tpu_custom_call.1} parent=1 // pred_check
      _
    $region7: #{tpu_custom_call.1} parent=1 // pred_check_branch
      %27 = sbr.rel (0) target = $region9
    $region8: #{tpu_custom_call.1} parent=1 // pred_region
      %s28 = sadd.s32 0, 0
      %s29 = smul.u32 128, %s28
      %s31 = ssub.s32 16384, 16384
      %32 = vsyncadd [#allocation6], %s31
      %s33 = smul.addr %s29, 128
      %s34 = scalar_lea.hbm %s1, %s33
      %s35 = sshll.u32 [#allocation5], 4
      %s36 = int_to_ptr.vmem [resolvable:$true] %s35
      %41 = dma.hbm_to_vmem [thread:$0]  %s34, 16384, %s36, [#allocation6], 128, 128, 8
    $region9: #{tpu_custom_call.1} parent=1 // pred_fallthru
      _
    // Predicated region
    $region10: #{tpu_custom_call.1} parent=1 // pred_check
      _
    $region11: #{tpu_custom_call.1} parent=1 // pred_check_branch
      %43 = sbr.rel (0) target = $region13
    $region12: #{tpu_custom_call.1} parent=1 // pred_region
      %44 = dma.done [#allocation3], 16384
    $region13: #{tpu_custom_call.1} parent=1 // pred_fallthru
      _
    // Predicated region
    $region14: #{tpu_custom_call.1} parent=1 // pred_check
      _
    $region15: #{tpu_custom_call.1} parent=1 // pred_check_branch
      %46 = sbr.rel (0) target = $region17
    $region16: #{tpu_custom_call.1} parent=1 // pred_region
      %47 = dma.done [#allocation6], 16384
    $region17: #{tpu_custom_call.1} parent=1 // pred_fallthru
      _
    %s48 = sadd.s32 0, 0
    %s49 = smul.u32 128, %s48
    %s50 = sadd.s32 0, 0
    %s51 = smul.u32 128, %s50
    %p52 = scmp.eq.s32.totalorder 0, 0
    // Predicated region
    $region18: #{tpu_custom_call.1} parent=1 // pred_check
      %p53 = pneg %p52
    $region19: #{tpu_custom_call.1} parent=1 // pred_check_branch
      %55 = sbr.rel (%p53) target = $region21
    $region20: #{tpu_custom_call.1} parent=1 // pred_region
      %56 = vst [vmem:[#allocation7] sm:$0x1] 0.0
    $region21: #{tpu_custom_call.1} parent=1 // pred_fallthru
      _
    %v57 = vld [vmem:[#allocation2] sm:$0xff]
    %v58 = vld [vmem:[#allocation2 + $0x8] sm:$0xff]
    %v59 = vld [vmem:[#allocation2 + $0x10] sm:$0xff]
    %v60 = vld [vmem:[#allocation2 + $0x18] sm:$0xff]
    %v61 = vld [vmem:[#allocation2 + $0x20] sm:$0xff]
    %v62 = vld [vmem:[#allocation2 + $0x28] sm:$0xff]
    %v63 = vld [vmem:[#allocation2 + $0x30] sm:$0xff]
    %v64 = vld [vmem:[#allocation2 + $0x38] sm:$0xff]
    %v65 = vld [vmem:[#allocation2 + $0x40] sm:$0xff]
    %v66 = vld [vmem:[#allocation2 + $0x48] sm:$0xff]
    %v67 = vld [vmem:[#allocation2 + $0x50] sm:$0xff]
    %v68 = vld [vmem:[#allocation2 + $0x58] sm:$0xff]
    %v69 = vld [vmem:[#allocation2 + $0x60] sm:$0xff]
    %v70 = vld [vmem:[#allocation2 + $0x68] sm:$0xff]
    %v71 = vld [vmem:[#allocation2 + $0x70] sm:$0xff]
    %v72 = vld [vmem:[#allocation2 + $0x78] sm:$0xff]
    %v73 = vld [vmem:[#allocation2 + $0x80] sm:$0xff]
    %v74 = vld [vmem:[#allocation2 + $0x88] sm:$0xff]
    %v75 = vld [vmem:[#allocation2 + $0x90] sm:$0xff]
    %v76 = vld [vmem:[#allocation2 + $0x98] sm:$0xff]
    %v77 = vld [vmem:[#allocation2 + $0xa0] sm:$0xff]
    %v78 = vld [vmem:[#allocation2 + $0xa8] sm:$0xff]
    %v79 = vld [vmem:[#allocation2 + $0xb0] sm:$0xff]
    %v80 = vld [vmem:[#allocation2 + $0xb8] sm:$0xff]
    %v81 = vld [vmem:[#allocation2 + $0xc0] sm:$0xff]
    %v82 = vld [vmem:[#allocation2 + $0xc8] sm:$0xff]
    %v83 = vld [vmem:[#allocation2 + $0xd0] sm:$0xff]
    %v84 = vld [vmem:[#allocation2 + $0xd8] sm:$0xff]
    %v85 = vld [vmem:[#allocation2 + $0xe0] sm:$0xff]
    %v86 = vld [vmem:[#allocation2 + $0xe8] sm:$0xff]
    %v87 = vld [vmem:[#allocation2 + $0xf0] sm:$0xff]
    %v88 = vld [vmem:[#allocation2 + $0xf8] sm:$0xff]
    %v89 = vld [vmem:[#allocation2 + $0x100] sm:$0xff]
    %v90 = vld [vmem:[#allocation2 + $0x108] sm:$0xff]
    %v91 = vld [vmem:[#allocation2 + $0x110] sm:$0xff]
    %v92 = vld [vmem:[#allocation2 + $0x118] sm:$0xff]
    %v93 = vld [vmem:[#allocation2 + $0x120] sm:$0xff]
    %v94 = vld [vmem:[#allocation2 + $0x128] sm:$0xff]
    %v95 = vld [vmem:[#allocation2 + $0x130] sm:$0xff]
    %v96 = vld [vmem:[#allocation2 + $0x138] sm:$0xff]
    %v97 = vld [vmem:[#allocation2 + $0x140] sm:$0xff]
    %v98 = vld [vmem:[#allocation2 + $0x148] sm:$0xff]
    %v99 = vld [vmem:[#allocation2 + $0x150] sm:$0xff]
    %v100 = vld [vmem:[#allocation2 + $0x158] sm:$0xff]
    %v101 = vld [vmem:[#allocation2 + $0x160] sm:$0xff]
    %v102 = vld [vmem:[#allocation2 + $0x168] sm:$0xff]
    %v103 = vld [vmem:[#allocation2 + $0x170] sm:$0xff]
    %v104 = vld [vmem:[#allocation2 + $0x178] sm:$0xff]
    %v105 = vld [vmem:[#allocation2 + $0x180] sm:$0xff]
    %v106 = vld [vmem:[#allocation2 + $0x188] sm:$0xff]
    %v107 = vld [vmem:[#allocation2 + $0x190] sm:$0xff]
    %v108 = vld [vmem:[#allocation2 + $0x198] sm:$0xff]
    %v109 = vld [vmem:[#allocation2 + $0x1a0] sm:$0xff]
    %v110 = vld [vmem:[#allocation2 + $0x1a8] sm:$0xff]
    %v111 = vld [vmem:[#allocation2 + $0x1b0] sm:$0xff]
    %v112 = vld [vmem:[#allocation2 + $0x1b8] sm:$0xff]
    %v113 = vld [vmem:[#allocation2 + $0x1c0] sm:$0xff]
    %v114 = vld [vmem:[#allocation2 + $0x1c8] sm:$0xff]
    %v115 = vld [vmem:[#allocation2 + $0x1d0] sm:$0xff]
    %v116 = vld [vmem:[#allocation2 + $0x1d8] sm:$0xff]
    %v117 = vld [vmem:[#allocation2 + $0x1e0] sm:$0xff]
    %v118 = vld [vmem:[#allocation2 + $0x1e8] sm:$0xff]
    %v119 = vld [vmem:[#allocation2 + $0x1f0] sm:$0xff]
    %v120 = vld [vmem:[#allocation2 + $0x1f8] sm:$0xff]
    %v121 = vld [vmem:[#allocation2 + $0x200] sm:$0xff]
    %v122 = vld [vmem:[#allocation2 + $0x208] sm:$0xff]
    %v123 = vld [vmem:[#allocation2 + $0x210] sm:$0xff]
    %v124 = vld [vmem:[#allocation2 + $0x218] sm:$0xff]
    %v125 = vld [vmem:[#allocation2 + $0x220] sm:$0xff]
    %v126 = vld [vmem:[#allocation2 + $0x228] sm:$0xff]
    %v127 = vld [vmem:[#allocation2 + $0x230] sm:$0xff]
    %v128 = vld [vmem:[#allocation2 + $0x238] sm:$0xff]
    %v129 = vld [vmem:[#allocation2 + $0x240] sm:$0xff]
    %v130 = vld [vmem:[#allocation2 + $0x248] sm:$0xff]
    %v131 = vld [vmem:[#allocation2 + $0x250] sm:$0xff]
    %v132 = vld [vmem:[#allocation2 + $0x258] sm:$0xff]
    %v133 = vld [vmem:[#allocation2 + $0x260] sm:$0xff]
    %v134 = vld [vmem:[#allocation2 + $0x268] sm:$0xff]
    %v135 = vld [vmem:[#allocation2 + $0x270] sm:$0xff]
    %v136 = vld [vmem:[#allocation2 + $0x278] sm:$0xff]
    %v137 = vld [vmem:[#allocation2 + $0x280] sm:$0xff]
    %v138 = vld [vmem:[#allocation2 + $0x288] sm:$0xff]
    %v139 = vld [vmem:[#allocation2 + $0x290] sm:$0xff]
    %v140 = vld [vmem:[#allocation2 + $0x298] sm:$0xff]
    %v141 = vld [vmem:[#allocation2 + $0x2a0] sm:$0xff]
    %v142 = vld [vmem:[#allocation2 + $0x2a8] sm:$0xff]
    %v143 = vld [vmem:[#allocation2 + $0x2b0] sm:$0xff]
    %v144 = vld [vmem:[#allocation2 + $0x2b8] sm:$0xff]
    %v145 = vld [vmem:[#allocation2 + $0x2c0] sm:$0xff]
    %v146 = vld [vmem:[#allocation2 + $0x2c8] sm:$0xff]
    %v147 = vld [vmem:[#allocation2 + $0x2d0] sm:$0xff]
    %v148 = vld [vmem:[#allocation2 + $0x2d8] sm:$0xff]
    %v149 = vld [vmem:[#allocation2 + $0x2e0] sm:$0xff]
    %v150 = vld [vmem:[#allocation2 + $0x2e8] sm:$0xff]
    %v151 = vld [vmem:[#allocation2 + $0x2f0] sm:$0xff]
    %v152 = vld [vmem:[#allocation2 + $0x2f8] sm:$0xff]
    %v153 = vld [vmem:[#allocation2 + $0x300] sm:$0xff]
    %v154 = vld [vmem:[#allocation2 + $0x308] sm:$0xff]
    %v155 = vld [vmem:[#allocation2 + $0x310] sm:$0xff]
    %v156 = vld [vmem:[#allocation2 + $0x318] sm:$0xff]
    %v157 = vld [vmem:[#allocation2 + $0x320] sm:$0xff]
    %v158 = vld [vmem:[#allocation2 + $0x328] sm:$0xff]
    %v159 = vld [vmem:[#allocation2 + $0x330] sm:$0xff]
    %v160 = vld [vmem:[#allocation2 + $0x338] sm:$0xff]
    %v161 = vld [vmem:[#allocation2 + $0x340] sm:$0xff]
    %v162 = vld [vmem:[#allocation2 + $0x348] sm:$0xff]
    %v163 = vld [vmem:[#allocation2 + $0x350] sm:$0xff]
    %v164 = vld [vmem:[#allocation2 + $0x358] sm:$0xff]
    %v165 = vld [vmem:[#allocation2 + $0x360] sm:$0xff]
    %v166 = vld [vmem:[#allocation2 + $0x368] sm:$0xff]
    %v167 = vld [vmem:[#allocation2 + $0x370] sm:$0xff]
    %v168 = vld [vmem:[#allocation2 + $0x378] sm:$0xff]
    %v169 = vld [vmem:[#allocation2 + $0x380] sm:$0xff]
    %v170 = vld [vmem:[#allocation2 + $0x388] sm:$0xff]
    %v171 = vld [vmem:[#allocation2 + $0x390] sm:$0xff]
    %v172 = vld [vmem:[#allocation2 + $0x398] sm:$0xff]
    %v173 = vld [vmem:[#allocation2 + $0x3a0] sm:$0xff]
    %v174 = vld [vmem:[#allocation2 + $0x3a8] sm:$0xff]
    %v175 = vld [vmem:[#allocation2 + $0x3b0] sm:$0xff]
    %v176 = vld [vmem:[#allocation2 + $0x3b8] sm:$0xff]
    %v177 = vld [vmem:[#allocation2 + $0x3c0] sm:$0xff]
    %v178 = vld [vmem:[#allocation2 + $0x3c8] sm:$0xff]
    %v179 = vld [vmem:[#allocation2 + $0x3d0] sm:$0xff]
    %v180 = vld [vmem:[#allocation2 + $0x3d8] sm:$0xff]
    %v181 = vld [vmem:[#allocation2 + $0x3e0] sm:$0xff]
    %v182 = vld [vmem:[#allocation2 + $0x3e8] sm:$0xff]
    %v183 = vld [vmem:[#allocation2 + $0x3f0] sm:$0xff]
    %v184 = vld [vmem:[#allocation2 + $0x3f8] sm:$0xff]
    %v185 = vld [vmem:[#allocation5] sm:$0xff]
    %v186 = vld [vmem:[#allocation5 + $0x8] sm:$0xff]
    %v187 = vld [vmem:[#allocation5 + $0x10] sm:$0xff]
    %v188 = vld [vmem:[#allocation5 + $0x18] sm:$0xff]
    %v189 = vld [vmem:[#allocation5 + $0x20] sm:$0xff]
    %v190 = vld [vmem:[#allocation5 + $0x28] sm:$0xff]
    %v191 = vld [vmem:[#allocation5 + $0x30] sm:$0xff]
    %v192 = vld [vmem:[#allocation5 + $0x38] sm:$0xff]
    %v193 = vld [vmem:[#allocation5 + $0x40] sm:$0xff]
    %v194 = vld [vmem:[#allocation5 + $0x48] sm:$0xff]
    %v195 = vld [vmem:[#allocation5 + $0x50] sm:$0xff]
    %v196 = vld [vmem:[#allocation5 + $0x58] sm:$0xff]
    %v197 = vld [vmem:[#allocation5 + $0x60] sm:$0xff]
    %v198 = vld [vmem:[#allocation5 + $0x68] sm:$0xff]
    %v199 = vld [vmem:[#allocation5 + $0x70] sm:$0xff]
    %v200 = vld [vmem:[#allocation5 + $0x78] sm:$0xff]
    %v201 = vld [vmem:[#allocation5 + $0x80] sm:$0xff]
    %v202 = vld [vmem:[#allocation5 + $0x88] sm:$0xff]
    %v203 = vld [vmem:[#allocation5 + $0x90] sm:$0xff]
    %v204 = vld [vmem:[#allocation5 + $0x98] sm:$0xff]
    %v205 = vld [vmem:[#allocation5 + $0xa0] sm:$0xff]
    %v206 = vld [vmem:[#allocation5 + $0xa8] sm:$0xff]
    %v207 = vld [vmem:[#allocation5 + $0xb0] sm:$0xff]
    %v208 = vld [vmem:[#allocation5 + $0xb8] sm:$0xff]
    %v209 = vld [vmem:[#allocation5 + $0xc0] sm:$0xff]
    %v210 = vld [vmem:[#allocation5 + $0xc8] sm:$0xff]
    %v211 = vld [vmem:[#allocation5 + $0xd0] sm:$0xff]
    %v212 = vld [vmem:[#allocation5 + $0xd8] sm:$0xff]
    %v213 = vld [vmem:[#allocation5 + $0xe0] sm:$0xff]
    %v214 = vld [vmem:[#allocation5 + $0xe8] sm:$0xff]
    %v215 = vld [vmem:[#allocation5 + $0xf0] sm:$0xff]
    %v216 = vld [vmem:[#allocation5 + $0xf8] sm:$0xff]
    %v217 = vld [vmem:[#allocation5 + $0x100] sm:$0xff]
    %v218 = vld [vmem:[#allocation5 + $0x108] sm:$0xff]
    %v219 = vld [vmem:[#allocation5 + $0x110] sm:$0xff]
    %v220 = vld [vmem:[#allocation5 + $0x118] sm:$0xff]
    %v221 = vld [vmem:[#allocation5 + $0x120] sm:$0xff]
    %v222 = vld [vmem:[#allocation5 + $0x128] sm:$0xff]
    %v223 = vld [vmem:[#allocation5 + $0x130] sm:$0xff]
    %v224 = vld [vmem:[#allocation5 + $0x138] sm:$0xff]
    %v225 = vld [vmem:[#allocation5 + $0x140] sm:$0xff]
    %v226 = vld [vmem:[#allocation5 + $0x148] sm:$0xff]
    %v227 = vld [vmem:[#allocation5 + $0x150] sm:$0xff]
    %v228 = vld [vmem:[#allocation5 + $0x158] sm:$0xff]
    %v229 = vld [vmem:[#allocation5 + $0x160] sm:$0xff]
    %v230 = vld [vmem:[#allocation5 + $0x168] sm:$0xff]
    %v231 = vld [vmem:[#allocation5 + $0x170] sm:$0xff]
    %v232 = vld [vmem:[#allocation5 + $0x178] sm:$0xff]
    %v233 = vld [vmem:[#allocation5 + $0x180] sm:$0xff]
    %v234 = vld [vmem:[#allocation5 + $0x188] sm:$0xff]
    %v235 = vld [vmem:[#allocation5 + $0x190] sm:$0xff]
    %v236 = vld [vmem:[#allocation5 + $0x198] sm:$0xff]
    %v237 = vld [vmem:[#allocation5 + $0x1a0] sm:$0xff]
    %v238 = vld [vmem:[#allocation5 + $0x1a8] sm:$0xff]
    %v239 = vld [vmem:[#allocation5 + $0x1b0] sm:$0xff]
    %v240 = vld [vmem:[#allocation5 + $0x1b8] sm:$0xff]
    %v241 = vld [vmem:[#allocation5 + $0x1c0] sm:$0xff]
    %v242 = vld [vmem:[#allocation5 + $0x1c8] sm:$0xff]
    %v243 = vld [vmem:[#allocation5 + $0x1d0] sm:$0xff]
    %v244 = vld [vmem:[#allocation5 + $0x1d8] sm:$0xff]
    %v245 = vld [vmem:[#allocation5 + $0x1e0] sm:$0xff]
    %v246 = vld [vmem:[#allocation5 + $0x1e8] sm:$0xff]
    %v247 = vld [vmem:[#allocation5 + $0x1f0] sm:$0xff]
    %v248 = vld [vmem:[#allocation5 + $0x1f8] sm:$0xff]
    %v249 = vld [vmem:[#allocation5 + $0x200] sm:$0xff]
    %v250 = vld [vmem:[#allocation5 + $0x208] sm:$0xff]
    %v251 = vld [vmem:[#allocation5 + $0x210] sm:$0xff]
    %v252 = vld [vmem:[#allocation5 + $0x218] sm:$0xff]
    %v253 = vld [vmem:[#allocation5 + $0x220] sm:$0xff]
    %v254 = vld [vmem:[#allocation5 + $0x228] sm:$0xff]
    %v255 = vld [vmem:[#allocation5 + $0x230] sm:$0xff]
    %v256 = vld [vmem:[#allocation5 + $0x238] sm:$0xff]
    %v257 = vld [vmem:[#allocation5 + $0x240] sm:$0xff]
    %v258 = vld [vmem:[#allocation5 + $0x248] sm:$0xff]
    %v259 = vld [vmem:[#allocation5 + $0x250] sm:$0xff]
    %v260 = vld [vmem:[#allocation5 + $0x258] sm:$0xff]
    %v261 = vld [vmem:[#allocation5 + $0x260] sm:$0xff]
    %v262 = vld [vmem:[#allocation5 + $0x268] sm:$0xff]
    %v263 = vld [vmem:[#allocation5 + $0x270] sm:$0xff]
    %v264 = vld [vmem:[#allocation5 + $0x278] sm:$0xff]
    %v265 = vld [vmem:[#allocation5 + $0x280] sm:$0xff]
    %v266 = vld [vmem:[#allocation5 + $0x288] sm:$0xff]
    %v267 = vld [vmem:[#allocation5 + $0x290] sm:$0xff]
    %v268 = vld [vmem:[#allocation5 + $0x298] sm:$0xff]
    %v269 = vld [vmem:[#allocation5 + $0x2a0] sm:$0xff]
    %v270 = vld [vmem:[#allocation5 + $0x2a8] sm:$0xff]
    %v271 = vld [vmem:[#allocation5 + $0x2b0] sm:$0xff]
    %v272 = vld [vmem:[#allocation5 + $0x2b8] sm:$0xff]
    %v273 = vld [vmem:[#allocation5 + $0x2c0] sm:$0xff]
    %v274 = vld [vmem:[#allocation5 + $0x2c8] sm:$0xff]
    %v275 = vld [vmem:[#allocation5 + $0x2d0] sm:$0xff]
    %v276 = vld [vmem:[#allocation5 + $0x2d8] sm:$0xff]
    %v277 = vld [vmem:[#allocation5 + $0x2e0] sm:$0xff]
    %v278 = vld [vmem:[#allocation5 + $0x2e8] sm:$0xff]
    %v279 = vld [vmem:[#allocation5 + $0x2f0] sm:$0xff]
    %v280 = vld [vmem:[#allocation5 + $0x2f8] sm:$0xff]
    %v281 = vld [vmem:[#allocation5 + $0x300] sm:$0xff]
    %v282 = vld [vmem:[#allocation5 + $0x308] sm:$0xff]
    %v283 = vld [vmem:[#allocation5 + $0x310] sm:$0xff]
    %v284 = vld [vmem:[#allocation5 + $0x318] sm:$0xff]
    %v285 = vld [vmem:[#allocation5 + $0x320] sm:$0xff]
    %v286 = vld [vmem:[#allocation5 + $0x328] sm:$0xff]
    %v287 = vld [vmem:[#allocation5 + $0x330] sm:$0xff]
    %v288 = vld [vmem:[#allocation5 + $0x338] sm:$0xff]
    %v289 = vld [vmem:[#allocation5 + $0x340] sm:$0xff]
    %v290 = vld [vmem:[#allocation5 + $0x348] sm:$0xff]
    %v291 = vld [vmem:[#allocation5 + $0x350] sm:$0xff]
    %v292 = vld [vmem:[#allocation5 + $0x358] sm:$0xff]
    %v293 = vld [vmem:[#allocation5 + $0x360] sm:$0xff]
    %v294 = vld [vmem:[#allocation5 + $0x368] sm:$0xff]
    %v295 = vld [vmem:[#allocation5 + $0x370] sm:$0xff]
    %v296 = vld [vmem:[#allocation5 + $0x378] sm:$0xff]
    %v297 = vld [vmem:[#allocation5 + $0x380] sm:$0xff]
    %v298 = vld [vmem:[#allocation5 + $0x388] sm:$0xff]
    %v299 = vld [vmem:[#allocation5 + $0x390] sm:$0xff]
    %v300 = vld [vmem:[#allocation5 + $0x398] sm:$0xff]
    %v301 = vld [vmem:[#allocation5 + $0x3a0] sm:$0xff]
    %v302 = vld [vmem:[#allocation5 + $0x3a8] sm:$0xff]
    %v303 = vld [vmem:[#allocation5 + $0x3b0] sm:$0xff]
    %v304 = vld [vmem:[#allocation5 + $0x3b8] sm:$0xff]
    %v305 = vld [vmem:[#allocation5 + $0x3c0] sm:$0xff]
    %v306 = vld [vmem:[#allocation5 + $0x3c8] sm:$0xff]
    %v307 = vld [vmem:[#allocation5 + $0x3d0] sm:$0xff]
    %v308 = vld [vmem:[#allocation5 + $0x3d8] sm:$0xff]
    %v309 = vld [vmem:[#allocation5 + $0x3e0] sm:$0xff]
    %v310 = vld [vmem:[#allocation5 + $0x3e8] sm:$0xff]
    %v311 = vld [vmem:[#allocation5 + $0x3f0] sm:$0xff]
    %v312 = vld [vmem:[#allocation5 + $0x3f8] sm:$0xff]
    %v313 = vsub.f32 %v57, %v185
    %v314 = vsub.f32 %v58, %v186
    %v315 = vsub.f32 %v59, %v187
    %v316 = vsub.f32 %v60, %v188
    %v317 = vsub.f32 %v61, %v189
    %v318 = vsub.f32 %v62, %v190
    %v319 = vsub.f32 %v63, %v191
    %v320 = vsub.f32 %v64, %v192
    %v321 = vsub.f32 %v65, %v193
    %v322 = vsub.f32 %v66, %v194
    %v323 = vsub.f32 %v67, %v195
    %v324 = vsub.f32 %v68, %v196
    %v325 = vsub.f32 %v69, %v197
    %v326 = vsub.f32 %v70, %v198
    %v327 = vsub.f32 %v71, %v199
    %v328 = vsub.f32 %v72, %v200
    %v329 = vsub.f32 %v73, %v201
    %v330 = vsub.f32 %v74, %v202
    %v331 = vsub.f32 %v75, %v203
    %v332 = vsub.f32 %v76, %v204
    %v333 = vsub.f32 %v77, %v205
    %v334 = vsub.f32 %v78, %v206
    %v335 = vsub.f32 %v79, %v207
    %v336 = vsub.f32 %v80, %v208
    %v337 = vsub.f32 %v81, %v209
    %v338 = vsub.f32 %v82, %v210
    %v339 = vsub.f32 %v83, %v211
    %v340 = vsub.f32 %v84, %v212
    %v341 = vsub.f32 %v85, %v213
    %v342 = vsub.f32 %v86, %v214
    %v343 = vsub.f32 %v87, %v215
    %v344 = vsub.f32 %v88, %v216
    %v345 = vsub.f32 %v89, %v217
    %v346 = vsub.f32 %v90, %v218
    %v347 = vsub.f32 %v91, %v219
    %v348 = vsub.f32 %v92, %v220
    %v349 = vsub.f32 %v93, %v221
    %v350 = vsub.f32 %v94, %v222
    %v351 = vsub.f32 %v95, %v223
    %v352 = vsub.f32 %v96, %v224
    %v353 = vsub.f32 %v97, %v225
    %v354 = vsub.f32 %v98, %v226
    %v355 = vsub.f32 %v99, %v227
    %v356 = vsub.f32 %v100, %v228
    %v357 = vsub.f32 %v101, %v229
    %v358 = vsub.f32 %v102, %v230
    %v359 = vsub.f32 %v103, %v231
    %v360 = vsub.f32 %v104, %v232
    %v361 = vsub.f32 %v105, %v233
    %v362 = vsub.f32 %v106, %v234
    %v363 = vsub.f32 %v107, %v235
    %v364 = vsub.f32 %v108, %v236
    %v365 = vsub.f32 %v109, %v237
    %v366 = vsub.f32 %v110, %v238
    %v367 = vsub.f32 %v111, %v239
    %v368 = vsub.f32 %v112, %v240
    %v369 = vsub.f32 %v113, %v241
    %v370 = vsub.f32 %v114, %v242
    %v371 = vsub.f32 %v115, %v243
    %v372 = vsub.f32 %v116, %v244
    %v373 = vsub.f32 %v117, %v245
    %v374 = vsub.f32 %v118, %v246
    %v375 = vsub.f32 %v119, %v247
    %v376 = vsub.f32 %v120, %v248
    %v377 = vsub.f32 %v121, %v249
    %v378 = vsub.f32 %v122, %v250
    %v379 = vsub.f32 %v123, %v251
    %v380 = vsub.f32 %v124, %v252
    %v381 = vsub.f32 %v125, %v253
    %v382 = vsub.f32 %v126, %v254
    %v383 = vsub.f32 %v127, %v255
    %v384 = vsub.f32 %v128, %v256
    %v385 = vsub.f32 %v129, %v257
    %v386 = vsub.f32 %v130, %v258
    %v387 = vsub.f32 %v131, %v259
    %v388 = vsub.f32 %v132, %v260
    %v389 = vsub.f32 %v133, %v261
    %v390 = vsub.f32 %v134, %v262
    %v391 = vsub.f32 %v135, %v263
    %v392 = vsub.f32 %v136, %v264
    %v393 = vsub.f32 %v137, %v265
    %v394 = vsub.f32 %v138, %v266
    %v395 = vsub.f32 %v139, %v267
    %v396 = vsub.f32 %v140, %v268
    %v397 = vsub.f32 %v141, %v269
    %v398 = vsub.f32 %v142, %v270
    %v399 = vsub.f32 %v143, %v271
    %v400 = vsub.f32 %v144, %v272
    %v401 = vsub.f32 %v145, %v273
    %v402 = vsub.f32 %v146, %v274
    %v403 = vsub.f32 %v147, %v275
    %v404 = vsub.f32 %v148, %v276
    %v405 = vsub.f32 %v149, %v277
    %v406 = vsub.f32 %v150, %v278
    %v407 = vsub.f32 %v151, %v279
    %v408 = vsub.f32 %v152, %v280
    %v409 = vsub.f32 %v153, %v281
    %v410 = vsub.f32 %v154, %v282
    %v411 = vsub.f32 %v155, %v283
    %v412 = vsub.f32 %v156, %v284
    %v413 = vsub.f32 %v157, %v285
    %v414 = vsub.f32 %v158, %v286
    %v415 = vsub.f32 %v159, %v287
    %v416 = vsub.f32 %v160, %v288
    %v417 = vsub.f32 %v161, %v289
    %v418 = vsub.f32 %v162, %v290
    %v419 = vsub.f32 %v163, %v291
    %v420 = vsub.f32 %v164, %v292
    %v421 = vsub.f32 %v165, %v293
    %v422 = vsub.f32 %v166, %v294
    %v423 = vsub.f32 %v167, %v295
    %v424 = vsub.f32 %v168, %v296
    %v425 = vsub.f32 %v169, %v297
    %v426 = vsub.f32 %v170, %v298
    %v427 = vsub.f32 %v171, %v299
    %v428 = vsub.f32 %v172, %v300
    %v429 = vsub.f32 %v173, %v301
    %v430 = vsub.f32 %v174, %v302
    %v431 = vsub.f32 %v175, %v303
    %v432 = vsub.f32 %v176, %v304
    %v433 = vsub.f32 %v177, %v305
    %v434 = vsub.f32 %v178, %v306
    %v435 = vsub.f32 %v179, %v307
    %v436 = vsub.f32 %v180, %v308
    %v437 = vsub.f32 %v181, %v309
    %v438 = vsub.f32 %v182, %v310
    %v439 = vsub.f32 %v183, %v311
    %v440 = vsub.f32 %v184, %v312
    %v441 = vmul.f32 %v313, %v313
    %v442 = vmul.f32 %v314, %v314
    %v443 = vmul.f32 %v315, %v315
    %v444 = vmul.f32 %v316, %v316
    %v445 = vmul.f32 %v317, %v317
    %v446 = vmul.f32 %v318, %v318
    %v447 = vmul.f32 %v319, %v319
    %v448 = vmul.f32 %v320, %v320
    %v449 = vmul.f32 %v321, %v321
    %v450 = vmul.f32 %v322, %v322
    %v451 = vmul.f32 %v323, %v323
    %v452 = vmul.f32 %v324, %v324
    %v453 = vmul.f32 %v325, %v325
    %v454 = vmul.f32 %v326, %v326
    %v455 = vmul.f32 %v327, %v327
    %v456 = vmul.f32 %v328, %v328
    %v457 = vmul.f32 %v329, %v329
    %v458 = vmul.f32 %v330, %v330
    %v459 = vmul.f32 %v331, %v331
    %v460 = vmul.f32 %v332, %v332
    %v461 = vmul.f32 %v333, %v333
    %v462 = vmul.f32 %v334, %v334
    %v463 = vmul.f32 %v335, %v335
    %v464 = vmul.f32 %v336, %v336
    %v465 = vmul.f32 %v337, %v337
    %v466 = vmul.f32 %v338, %v338
    %v467 = vmul.f32 %v339, %v339
    %v468 = vmul.f32 %v340, %v340
    %v469 = vmul.f32 %v341, %v341
    %v470 = vmul.f32 %v342, %v342
    %v471 = vmul.f32 %v343, %v343
    %v472 = vmul.f32 %v344, %v344
    %v473 = vmul.f32 %v345, %v345
    %v474 = vmul.f32 %v346, %v346
    %v475 = vmul.f32 %v347, %v347
    %v476 = vmul.f32 %v348, %v348
    %v477 = vmul.f32 %v349, %v349
    %v478 = vmul.f32 %v350, %v350
    %v479 = vmul.f32 %v351, %v351
    %v480 = vmul.f32 %v352, %v352
    %v481 = vmul.f32 %v353, %v353
    %v482 = vmul.f32 %v354, %v354
    %v483 = vmul.f32 %v355, %v355
    %v484 = vmul.f32 %v356, %v356
    %v485 = vmul.f32 %v357, %v357
    %v486 = vmul.f32 %v358, %v358
    %v487 = vmul.f32 %v359, %v359
    %v488 = vmul.f32 %v360, %v360
    %v489 = vmul.f32 %v361, %v361
    %v490 = vmul.f32 %v362, %v362
    %v491 = vmul.f32 %v363, %v363
    %v492 = vmul.f32 %v364, %v364
    %v493 = vmul.f32 %v365, %v365
    %v494 = vmul.f32 %v366, %v366
    %v495 = vmul.f32 %v367, %v367
    %v496 = vmul.f32 %v368, %v368
    %v497 = vmul.f32 %v369, %v369
    %v498 = vmul.f32 %v370, %v370
    %v499 = vmul.f32 %v371, %v371
    %v500 = vmul.f32 %v372, %v372
    %v501 = vmul.f32 %v373, %v373
    %v502 = vmul.f32 %v374, %v374
    %v503 = vmul.f32 %v375, %v375
    %v504 = vmul.f32 %v376, %v376
    %v505 = vmul.f32 %v377, %v377
    %v506 = vmul.f32 %v378, %v378
    %v507 = vmul.f32 %v379, %v379
    %v508 = vmul.f32 %v380, %v380
    %v509 = vmul.f32 %v381, %v381
    %v510 = vmul.f32 %v382, %v382
    %v511 = vmul.f32 %v383, %v383
    %v512 = vmul.f32 %v384, %v384
    %v513 = vmul.f32 %v385, %v385
    %v514 = vmul.f32 %v386, %v386
    %v515 = vmul.f32 %v387, %v387
    %v516 = vmul.f32 %v388, %v388
    %v517 = vmul.f32 %v389, %v389
    %v518 = vmul.f32 %v390, %v390
    %v519 = vmul.f32 %v391, %v391
    %v520 = vmul.f32 %v392, %v392
    %v521 = vmul.f32 %v393, %v393
    %v522 = vmul.f32 %v394, %v394
    %v523 = vmul.f32 %v395, %v395
    %v524 = vmul.f32 %v396, %v396
    %v525 = vmul.f32 %v397, %v397
    %v526 = vmul.f32 %v398, %v398
    %v527 = vmul.f32 %v399, %v399
    %v528 = vmul.f32 %v400, %v400
    %v529 = vmul.f32 %v401, %v401
    %v530 = vmul.f32 %v402, %v402
    %v531 = vmul.f32 %v403, %v403
    %v532 = vmul.f32 %v404, %v404
    %v533 = vmul.f32 %v405, %v405
    %v534 = vmul.f32 %v406, %v406
    %v535 = vmul.f32 %v407, %v407
    %v536 = vmul.f32 %v408, %v408
    %v537 = vmul.f32 %v409, %v409
    %v538 = vmul.f32 %v410, %v410
    %v539 = vmul.f32 %v411, %v411
    %v540 = vmul.f32 %v412, %v412
    %v541 = vmul.f32 %v413, %v413
    %v542 = vmul.f32 %v414, %v414
    %v543 = vmul.f32 %v415, %v415
    %v544 = vmul.f32 %v416, %v416
    %v545 = vmul.f32 %v417, %v417
    %v546 = vmul.f32 %v418, %v418
    %v547 = vmul.f32 %v419, %v419
    %v548 = vmul.f32 %v420, %v420
    %v549 = vmul.f32 %v421, %v421
    %v550 = vmul.f32 %v422, %v422
    %v551 = vmul.f32 %v423, %v423
    %v552 = vmul.f32 %v424, %v424
    %v553 = vmul.f32 %v425, %v425
    %v554 = vmul.f32 %v426, %v426
    %v555 = vmul.f32 %v427, %v427
    %v556 = vmul.f32 %v428, %v428
    %v557 = vmul.f32 %v429, %v429
    %v558 = vmul.f32 %v430, %v430
    %v559 = vmul.f32 %v431, %v431
    %v560 = vmul.f32 %v432, %v432
    %v561 = vmul.f32 %v433, %v433
    %v562 = vmul.f32 %v434, %v434
    %v563 = vmul.f32 %v435, %v435
    %v564 = vmul.f32 %v436, %v436
    %v565 = vmul.f32 %v437, %v437
    %v566 = vmul.f32 %v438, %v438
    %v567 = vmul.f32 %v439, %v439
    %v568 = vmul.f32 %v440, %v440
    %v569 = vadd.f32 %v441, 1e-06
    %v570 = vadd.f32 %v442, 1e-06
    %v571 = vadd.f32 %v443, 1e-06
    %v572 = vadd.f32 %v444, 1e-06
    %v573 = vadd.f32 %v445, 1e-06
    %v574 = vadd.f32 %v446, 1e-06
    %v575 = vadd.f32 %v447, 1e-06
    %v576 = vadd.f32 %v448, 1e-06
    %v577 = vadd.f32 %v449, 1e-06
    %v578 = vadd.f32 %v450, 1e-06
    %v579 = vadd.f32 %v451, 1e-06
    %v580 = vadd.f32 %v452, 1e-06
    %v581 = vadd.f32 %v453, 1e-06
    %v582 = vadd.f32 %v454, 1e-06
    %v583 = vadd.f32 %v455, 1e-06
    %v584 = vadd.f32 %v456, 1e-06
    %v585 = vadd.f32 %v457, 1e-06
    %v586 = vadd.f32 %v458, 1e-06
    %v587 = vadd.f32 %v459, 1e-06
    %v588 = vadd.f32 %v460, 1e-06
    %v589 = vadd.f32 %v461, 1e-06
    %v590 = vadd.f32 %v462, 1e-06
    %v591 = vadd.f32 %v463, 1e-06
    %v592 = vadd.f32 %v464, 1e-06
    %v593 = vadd.f32 %v465, 1e-06
    %v594 = vadd.f32 %v466, 1e-06
    %v595 = vadd.f32 %v467, 1e-06
    %v596 = vadd.f32 %v468, 1e-06
    %v597 = vadd.f32 %v469, 1e-06
    %v598 = vadd.f32 %v470, 1e-06
    %v599 = vadd.f32 %v471, 1e-06
    %v600 = vadd.f32 %v472, 1e-06
    %v601 = vadd.f32 %v473, 1e-06
    %v602 = vadd.f32 %v474, 1e-06
    %v603 = vadd.f32 %v475, 1e-06
    %v604 = vadd.f32 %v476, 1e-06
    %v605 = vadd.f32 %v477, 1e-06
    %v606 = vadd.f32 %v478, 1e-06
    %v607 = vadd.f32 %v479, 1e-06
    %v608 = vadd.f32 %v480, 1e-06
    %v609 = vadd.f32 %v481, 1e-06
    %v610 = vadd.f32 %v482, 1e-06
    %v611 = vadd.f32 %v483, 1e-06
    %v612 = vadd.f32 %v484, 1e-06
    %v613 = vadd.f32 %v485, 1e-06
    %v614 = vadd.f32 %v486, 1e-06
    %v615 = vadd.f32 %v487, 1e-06
    %v616 = vadd.f32 %v488, 1e-06
    %v617 = vadd.f32 %v489, 1e-06
    %v618 = vadd.f32 %v490, 1e-06
    %v619 = vadd.f32 %v491, 1e-06
    %v620 = vadd.f32 %v492, 1e-06
    %v621 = vadd.f32 %v493, 1e-06
    %v622 = vadd.f32 %v494, 1e-06
    %v623 = vadd.f32 %v495, 1e-06
    %v624 = vadd.f32 %v496, 1e-06
    %v625 = vadd.f32 %v497, 1e-06
    %v626 = vadd.f32 %v498, 1e-06
    %v627 = vadd.f32 %v499, 1e-06
    %v628 = vadd.f32 %v500, 1e-06
    %v629 = vadd.f32 %v501, 1e-06
    %v630 = vadd.f32 %v502, 1e-06
    %v631 = vadd.f32 %v503, 1e-06
    %v632 = vadd.f32 %v504, 1e-06
    %v633 = vadd.f32 %v505, 1e-06
    %v634 = vadd.f32 %v506, 1e-06
    %v635 = vadd.f32 %v507, 1e-06
    %v636 = vadd.f32 %v508, 1e-06
    %v637 = vadd.f32 %v509, 1e-06
    %v638 = vadd.f32 %v510, 1e-06
    %v639 = vadd.f32 %v511, 1e-06
    %v640 = vadd.f32 %v512, 1e-06
    %v641 = vadd.f32 %v513, 1e-06
    %v642 = vadd.f32 %v514, 1e-06
    %v643 = vadd.f32 %v515, 1e-06
    %v644 = vadd.f32 %v516, 1e-06
    %v645 = vadd.f32 %v517, 1e-06
    %v646 = vadd.f32 %v518, 1e-06
    %v647 = vadd.f32 %v519, 1e-06
    %v648 = vadd.f32 %v520, 1e-06
    %v649 = vadd.f32 %v521, 1e-06
    %v650 = vadd.f32 %v522, 1e-06
    %v651 = vadd.f32 %v523, 1e-06
    %v652 = vadd.f32 %v524, 1e-06
    %v653 = vadd.f32 %v525, 1e-06
    %v654 = vadd.f32 %v526, 1e-06
    %v655 = vadd.f32 %v527, 1e-06
    %v656 = vadd.f32 %v528, 1e-06
    %v657 = vadd.f32 %v529, 1e-06
    %v658 = vadd.f32 %v530, 1e-06
    %v659 = vadd.f32 %v531, 1e-06
    %v660 = vadd.f32 %v532, 1e-06
    %v661 = vadd.f32 %v533, 1e-06
    %v662 = vadd.f32 %v534, 1e-06
    %v663 = vadd.f32 %v535, 1e-06
    %v664 = vadd.f32 %v536, 1e-06
    %v665 = vadd.f32 %v537, 1e-06
    %v666 = vadd.f32 %v538, 1e-06
    %v667 = vadd.f32 %v539, 1e-06
    %v668 = vadd.f32 %v540, 1e-06
    %v669 = vadd.f32 %v541, 1e-06
    %v670 = vadd.f32 %v542, 1e-06
    %v671 = vadd.f32 %v543, 1e-06
    %v672 = vadd.f32 %v544, 1e-06
    %v673 = vadd.f32 %v545, 1e-06
    %v674 = vadd.f32 %v546, 1e-06
    %v675 = vadd.f32 %v547, 1e-06
    %v676 = vadd.f32 %v548, 1e-06
    %v677 = vadd.f32 %v549, 1e-06
    %v678 = vadd.f32 %v550, 1e-06
    %v679 = vadd.f32 %v551, 1e-06
    %v680 = vadd.f32 %v552, 1e-06
    %v681 = vadd.f32 %v553, 1e-06
    %v682 = vadd.f32 %v554, 1e-06
    %v683 = vadd.f32 %v555, 1e-06
    %v684 = vadd.f32 %v556, 1e-06
    %v685 = vadd.f32 %v557, 1e-06
    %v686 = vadd.f32 %v558, 1e-06
    %v687 = vadd.f32 %v559, 1e-06
    %v688 = vadd.f32 %v560, 1e-06
    %v689 = vadd.f32 %v561, 1e-06
    %v690 = vadd.f32 %v562, 1e-06
    %v691 = vadd.f32 %v563, 1e-06
    %v692 = vadd.f32 %v564, 1e-06
    %v693 = vadd.f32 %v565, 1e-06
    %v694 = vadd.f32 %v566, 1e-06
    %v695 = vadd.f32 %v567, 1e-06
    %v696 = vadd.f32 %v568, 1e-06
    %v697 = vrsqrt.pop %v569
    %v698 = vmul.f32 %v569, %v697
    %vm699 = vcmp.eq.f32.partialorder %v569, inf
    %v700 = vsel %vm699, %v569, %v698
    %vm701 = vcmp.eq.f32.partialorder %v569, 0.0
    %v702 = vand.u32 %v569, 2147483648
    %v703 = vsel %vm701, %v702, %v700
    %v704 = vrsqrt.pop %v570
    %v705 = vmul.f32 %v570, %v704
    %vm706 = vcmp.eq.f32.partialorder %v570, inf
    %v707 = vsel %vm706, %v570, %v705
    %vm708 = vcmp.eq.f32.partialorder %v570, 0.0
    %v709 = vand.u32 %v570, 2147483648
    %v710 = vsel %vm708, %v709, %v707
    %v711 = vrsqrt.pop %v571
    %v712 = vmul.f32 %v571, %v711
    %vm713 = vcmp.eq.f32.partialorder %v571, inf
    %v714 = vsel %vm713, %v571, %v712
    %vm715 = vcmp.eq.f32.partialorder %v571, 0.0
    %v716 = vand.u32 %v571, 2147483648
    %v717 = vsel %vm715, %v716, %v714
    %v718 = vrsqrt.pop %v572
    %v719 = vmul.f32 %v572, %v718
    %vm720 = vcmp.eq.f32.partialorder %v572, inf
    %v721 = vsel %vm720, %v572, %v719
    %vm722 = vcmp.eq.f32.partialorder %v572, 0.0
    %v723 = vand.u32 %v572, 2147483648
    %v724 = vsel %vm722, %v723, %v721
    %v725 = vrsqrt.pop %v573
    %v726 = vmul.f32 %v573, %v725
    %vm727 = vcmp.eq.f32.partialorder %v573, inf
    %v728 = vsel %vm727, %v573, %v726
    %vm729 = vcmp.eq.f32.partialorder %v573, 0.0
    %v730 = vand.u32 %v573, 2147483648
    %v731 = vsel %vm729, %v730, %v728
    %v732 = vrsqrt.pop %v574
    %v733 = vmul.f32 %v574, %v732
    %vm734 = vcmp.eq.f32.partialorder %v574, inf
    %v735 = vsel %vm734, %v574, %v733
    %vm736 = vcmp.eq.f32.partialorder %v574, 0.0
    %v737 = vand.u32 %v574, 2147483648
    %v738 = vsel %vm736, %v737, %v735
    %v739 = vrsqrt.pop %v575
    %v740 = vmul.f32 %v575, %v739
    %vm741 = vcmp.eq.f32.partialorder %v575, inf
    %v742 = vsel %vm741, %v575, %v740
    %vm743 = vcmp.eq.f32.partialorder %v575, 0.0
    %v744 = vand.u32 %v575, 2147483648
    %v745 = vsel %vm743, %v744, %v742
    %v746 = vrsqrt.pop %v576
    %v747 = vmul.f32 %v576, %v746
    %vm748 = vcmp.eq.f32.partialorder %v576, inf
    %v749 = vsel %vm748, %v576, %v747
    %vm750 = vcmp.eq.f32.partialorder %v576, 0.0
    %v751 = vand.u32 %v576, 2147483648
    %v752 = vsel %vm750, %v751, %v749
    %v753 = vrsqrt.pop %v577
    %v754 = vmul.f32 %v577, %v753
    %vm755 = vcmp.eq.f32.partialorder %v577, inf
    %v756 = vsel %vm755, %v577, %v754
    %vm757 = vcmp.eq.f32.partialorder %v577, 0.0
    %v758 = vand.u32 %v577, 2147483648
    %v759 = vsel %vm757, %v758, %v756
    %v760 = vrsqrt.pop %v578
    %v761 = vmul.f32 %v578, %v760
    %vm762 = vcmp.eq.f32.partialorder %v578, inf
    %v763 = vsel %vm762, %v578, %v761
    %vm764 = vcmp.eq.f32.partialorder %v578, 0.0
    %v765 = vand.u32 %v578, 2147483648
    %v766 = vsel %vm764, %v765, %v763
    %v767 = vrsqrt.pop %v579
    %v768 = vmul.f32 %v579, %v767
    %vm769 = vcmp.eq.f32.partialorder %v579, inf
    %v770 = vsel %vm769, %v579, %v768
    %vm771 = vcmp.eq.f32.partialorder %v579, 0.0
    %v772 = vand.u32 %v579, 2147483648
    %v773 = vsel %vm771, %v772, %v770
    %v774 = vrsqrt.pop %v580
    %v775 = vmul.f32 %v580, %v774
    %vm776 = vcmp.eq.f32.partialorder %v580, inf
    %v777 = vsel %vm776, %v580, %v775
    %vm778 = vcmp.eq.f32.partialorder %v580, 0.0
    %v779 = vand.u32 %v580, 2147483648
    %v780 = vsel %vm778, %v779, %v777
    %v781 = vrsqrt.pop %v581
    %v782 = vmul.f32 %v581, %v781
    %vm783 = vcmp.eq.f32.partialorder %v581, inf
    %v784 = vsel %vm783, %v581, %v782
    %vm785 = vcmp.eq.f32.partialorder %v581, 0.0
    %v786 = vand.u32 %v581, 2147483648
    %v787 = vsel %vm785, %v786, %v784
    %v788 = vrsqrt.pop %v582
    %v789 = vmul.f32 %v582, %v788
    %vm790 = vcmp.eq.f32.partialorder %v582, inf
    %v791 = vsel %vm790, %v582, %v789
    %vm792 = vcmp.eq.f32.partialorder %v582, 0.0
    %v793 = vand.u32 %v582, 2147483648
    %v794 = vsel %vm792, %v793, %v791
    %v795 = vrsqrt.pop %v583
    %v796 = vmul.f32 %v583, %v795
    %vm797 = vcmp.eq.f32.partialorder %v583, inf
    %v798 = vsel %vm797, %v583, %v796
    %vm799 = vcmp.eq.f32.partialorder %v583, 0.0
    %v800 = vand.u32 %v583, 2147483648
    %v801 = vsel %vm799, %v800, %v798
    %v802 = vrsqrt.pop %v584
    %v803 = vmul.f32 %v584, %v802
    %vm804 = vcmp.eq.f32.partialorder %v584, inf
    %v805 = vsel %vm804, %v584, %v803
    %vm806 = vcmp.eq.f32.partialorder %v584, 0.0
    %v807 = vand.u32 %v584, 2147483648
    %v808 = vsel %vm806, %v807, %v805
    %v809 = vrsqrt.pop %v585
    %v810 = vmul.f32 %v585, %v809
    %vm811 = vcmp.eq.f32.partialorder %v585, inf
    %v812 = vsel %vm811, %v585, %v810
    %vm813 = vcmp.eq.f32.partialorder %v585, 0.0
    %v814 = vand.u32 %v585, 2147483648
    %v815 = vsel %vm813, %v814, %v812
    %v816 = vrsqrt.pop %v586
    %v817 = vmul.f32 %v586, %v816
    %vm818 = vcmp.eq.f32.partialorder %v586, inf
    %v819 = vsel %vm818, %v586, %v817
    %vm820 = vcmp.eq.f32.partialorder %v586, 0.0
    %v821 = vand.u32 %v586, 2147483648
    %v822 = vsel %vm820, %v821, %v819
    %v823 = vrsqrt.pop %v587
    %v824 = vmul.f32 %v587, %v823
    %vm825 = vcmp.eq.f32.partialorder %v587, inf
    %v826 = vsel %vm825, %v587, %v824
    %vm827 = vcmp.eq.f32.partialorder %v587, 0.0
    %v828 = vand.u32 %v587, 2147483648
    %v829 = vsel %vm827, %v828, %v826
    %v830 = vrsqrt.pop %v588
    %v831 = vmul.f32 %v588, %v830
    %vm832 = vcmp.eq.f32.partialorder %v588, inf
    %v833 = vsel %vm832, %v588, %v831
    %vm834 = vcmp.eq.f32.partialorder %v588, 0.0
    %v835 = vand.u32 %v588, 2147483648
    %v836 = vsel %vm834, %v835, %v833
    %v837 = vrsqrt.pop %v589
    %v838 = vmul.f32 %v589, %v837
    %vm839 = vcmp.eq.f32.partialorder %v589, inf
    %v840 = vsel %vm839, %v589, %v838
    %vm841 = vcmp.eq.f32.partialorder %v589, 0.0
    %v842 = vand.u32 %v589, 2147483648
    %v843 = vsel %vm841, %v842, %v840
    %v844 = vrsqrt.pop %v590
    %v845 = vmul.f32 %v590, %v844
    %vm846 = vcmp.eq.f32.partialorder %v590, inf
    %v847 = vsel %vm846, %v590, %v845
    %vm848 = vcmp.eq.f32.partialorder %v590, 0.0
    %v849 = vand.u32 %v590, 2147483648
    %v850 = vsel %vm848, %v849, %v847
    %v851 = vrsqrt.pop %v591
    %v852 = vmul.f32 %v591, %v851
    %vm853 = vcmp.eq.f32.partialorder %v591, inf
    %v854 = vsel %vm853, %v591, %v852
    %vm855 = vcmp.eq.f32.partialorder %v591, 0.0
    %v856 = vand.u32 %v591, 2147483648
    %v857 = vsel %vm855, %v856, %v854
    %v858 = vrsqrt.pop %v592
    %v859 = vmul.f32 %v592, %v858
    %vm860 = vcmp.eq.f32.partialorder %v592, inf
    %v861 = vsel %vm860, %v592, %v859
    %vm862 = vcmp.eq.f32.partialorder %v592, 0.0
    %v863 = vand.u32 %v592, 2147483648
    %v864 = vsel %vm862, %v863, %v861
    %v865 = vrsqrt.pop %v593
    %v866 = vmul.f32 %v593, %v865
    %vm867 = vcmp.eq.f32.partialorder %v593, inf
    %v868 = vsel %vm867, %v593, %v866
    %vm869 = vcmp.eq.f32.partialorder %v593, 0.0
    %v870 = vand.u32 %v593, 2147483648
    %v871 = vsel %vm869, %v870, %v868
    %v872 = vrsqrt.pop %v594
    %v873 = vmul.f32 %v594, %v872
    %vm874 = vcmp.eq.f32.partialorder %v594, inf
    %v875 = vsel %vm874, %v594, %v873
    %vm876 = vcmp.eq.f32.partialorder %v594, 0.0
    %v877 = vand.u32 %v594, 2147483648
    %v878 = vsel %vm876, %v877, %v875
    %v879 = vrsqrt.pop %v595
    %v880 = vmul.f32 %v595, %v879
    %vm881 = vcmp.eq.f32.partialorder %v595, inf
    %v882 = vsel %vm881, %v595, %v880
    %vm883 = vcmp.eq.f32.partialorder %v595, 0.0
    %v884 = vand.u32 %v595, 2147483648
    %v885 = vsel %vm883, %v884, %v882
    %v886 = vrsqrt.pop %v596
    %v887 = vmul.f32 %v596, %v886
    %vm888 = vcmp.eq.f32.partialorder %v596, inf
    %v889 = vsel %vm888, %v596, %v887
    %vm890 = vcmp.eq.f32.partialorder %v596, 0.0
    %v891 = vand.u32 %v596, 2147483648
    %v892 = vsel %vm890, %v891, %v889
    %v893 = vrsqrt.pop %v597
    %v894 = vmul.f32 %v597, %v893
    %vm895 = vcmp.eq.f32.partialorder %v597, inf
    %v896 = vsel %vm895, %v597, %v894
    %vm897 = vcmp.eq.f32.partialorder %v597, 0.0
    %v898 = vand.u32 %v597, 2147483648
    %v899 = vsel %vm897, %v898, %v896
    %v900 = vrsqrt.pop %v598
    %v901 = vmul.f32 %v598, %v900
    %vm902 = vcmp.eq.f32.partialorder %v598, inf
    %v903 = vsel %vm902, %v598, %v901
    %vm904 = vcmp.eq.f32.partialorder %v598, 0.0
    %v905 = vand.u32 %v598, 2147483648
    %v906 = vsel %vm904, %v905, %v903
    %v907 = vrsqrt.pop %v599
    %v908 = vmul.f32 %v599, %v907
    %vm909 = vcmp.eq.f32.partialorder %v599, inf
    %v910 = vsel %vm909, %v599, %v908
    %vm911 = vcmp.eq.f32.partialorder %v599, 0.0
    %v912 = vand.u32 %v599, 2147483648
    %v913 = vsel %vm911, %v912, %v910
    %v914 = vrsqrt.pop %v600
    %v915 = vmul.f32 %v600, %v914
    %vm916 = vcmp.eq.f32.partialorder %v600, inf
    %v917 = vsel %vm916, %v600, %v915
    %vm918 = vcmp.eq.f32.partialorder %v600, 0.0
    %v919 = vand.u32 %v600, 2147483648
    %v920 = vsel %vm918, %v919, %v917
    %v921 = vrsqrt.pop %v601
    %v922 = vmul.f32 %v601, %v921
    %vm923 = vcmp.eq.f32.partialorder %v601, inf
    %v924 = vsel %vm923, %v601, %v922
    %vm925 = vcmp.eq.f32.partialorder %v601, 0.0
    %v926 = vand.u32 %v601, 2147483648
    %v927 = vsel %vm925, %v926, %v924
    %v928 = vrsqrt.pop %v602
    %v929 = vmul.f32 %v602, %v928
    %vm930 = vcmp.eq.f32.partialorder %v602, inf
    %v931 = vsel %vm930, %v602, %v929
    %vm932 = vcmp.eq.f32.partialorder %v602, 0.0
    %v933 = vand.u32 %v602, 2147483648
    %v934 = vsel %vm932, %v933, %v931
    %v935 = vrsqrt.pop %v603
    %v936 = vmul.f32 %v603, %v935
    %vm937 = vcmp.eq.f32.partialorder %v603, inf
    %v938 = vsel %vm937, %v603, %v936
    %vm939 = vcmp.eq.f32.partialorder %v603, 0.0
    %v940 = vand.u32 %v603, 2147483648
    %v941 = vsel %vm939, %v940, %v938
    %v942 = vrsqrt.pop %v604
    %v943 = vmul.f32 %v604, %v942
    %vm944 = vcmp.eq.f32.partialorder %v604, inf
    %v945 = vsel %vm944, %v604, %v943
    %vm946 = vcmp.eq.f32.partialorder %v604, 0.0
    %v947 = vand.u32 %v604, 2147483648
    %v948 = vsel %vm946, %v947, %v945
    %v949 = vrsqrt.pop %v605
    %v950 = vmul.f32 %v605, %v949
    %vm951 = vcmp.eq.f32.partialorder %v605, inf
    %v952 = vsel %vm951, %v605, %v950
    %vm953 = vcmp.eq.f32.partialorder %v605, 0.0
    %v954 = vand.u32 %v605, 2147483648
    %v955 = vsel %vm953, %v954, %v952
    %v956 = vrsqrt.pop %v606
    %v957 = vmul.f32 %v606, %v956
    %vm958 = vcmp.eq.f32.partialorder %v606, inf
    %v959 = vsel %vm958, %v606, %v957
    %vm960 = vcmp.eq.f32.partialorder %v606, 0.0
    %v961 = vand.u32 %v606, 2147483648
    %v962 = vsel %vm960, %v961, %v959
    %v963 = vrsqrt.pop %v607
    %v964 = vmul.f32 %v607, %v963
    %vm965 = vcmp.eq.f32.partialorder %v607, inf
    %v966 = vsel %vm965, %v607, %v964
    %vm967 = vcmp.eq.f32.partialorder %v607, 0.0
    %v968 = vand.u32 %v607, 2147483648
    %v969 = vsel %vm967, %v968, %v966
    %v970 = vrsqrt.pop %v608
    %v971 = vmul.f32 %v608, %v970
    %vm972 = vcmp.eq.f32.partialorder %v608, inf
    %v973 = vsel %vm972, %v608, %v971
    %vm974 = vcmp.eq.f32.partialorder %v608, 0.0
    %v975 = vand.u32 %v608, 2147483648
    %v976 = vsel %vm974, %v975, %v973
    %v977 = vrsqrt.pop %v609
    %v978 = vmul.f32 %v609, %v977
    %vm979 = vcmp.eq.f32.partialorder %v609, inf
    %v980 = vsel %vm979, %v609, %v978
    %vm981 = vcmp.eq.f32.partialorder %v609, 0.0
    %v982 = vand.u32 %v609, 2147483648
    %v983 = vsel %vm981, %v982, %v980
    %v984 = vrsqrt.pop %v610
    %v985 = vmul.f32 %v610, %v984
    %vm986 = vcmp.eq.f32.partialorder %v610, inf
    %v987 = vsel %vm986, %v610, %v985
    %vm988 = vcmp.eq.f32.partialorder %v610, 0.0
    %v989 = vand.u32 %v610, 2147483648
    %v990 = vsel %vm988, %v989, %v987
    %v991 = vrsqrt.pop %v611
    %v992 = vmul.f32 %v611, %v991
    %vm993 = vcmp.eq.f32.partialorder %v611, inf
    %v994 = vsel %vm993, %v611, %v992
    %vm995 = vcmp.eq.f32.partialorder %v611, 0.0
    %v996 = vand.u32 %v611, 2147483648
    %v997 = vsel %vm995, %v996, %v994
    %v998 = vrsqrt.pop %v612
    %v999 = vmul.f32 %v612, %v998
    %vm1000 = vcmp.eq.f32.partialorder %v612, inf
    %v1001 = vsel %vm1000, %v612, %v999
    %vm1002 = vcmp.eq.f32.partialorder %v612, 0.0
    %v1003 = vand.u32 %v612, 2147483648
    %v1004 = vsel %vm1002, %v1003, %v1001
    %v1005 = vrsqrt.pop %v613
    %v1006 = vmul.f32 %v613, %v1005
    %vm1007 = vcmp.eq.f32.partialorder %v613, inf
    %v1008 = vsel %vm1007, %v613, %v1006
    %vm1009 = vcmp.eq.f32.partialorder %v613, 0.0
    %v1010 = vand.u32 %v613, 2147483648
    %v1011 = vsel %vm1009, %v1010, %v1008
    %v1012 = vrsqrt.pop %v614
    %v1013 = vmul.f32 %v614, %v1012
    %vm1014 = vcmp.eq.f32.partialorder %v614, inf
    %v1015 = vsel %vm1014, %v614, %v1013
    %vm1016 = vcmp.eq.f32.partialorder %v614, 0.0
    %v1017 = vand.u32 %v614, 2147483648
    %v1018 = vsel %vm1016, %v1017, %v1015
    %v1019 = vrsqrt.pop %v615
    %v1020 = vmul.f32 %v615, %v1019
    %vm1021 = vcmp.eq.f32.partialorder %v615, inf
    %v1022 = vsel %vm1021, %v615, %v1020
    %vm1023 = vcmp.eq.f32.partialorder %v615, 0.0
    %v1024 = vand.u32 %v615, 2147483648
    %v1025 = vsel %vm1023, %v1024, %v1022
    %v1026 = vrsqrt.pop %v616
    %v1027 = vmul.f32 %v616, %v1026
    %vm1028 = vcmp.eq.f32.partialorder %v616, inf
    %v1029 = vsel %vm1028, %v616, %v1027
    %vm1030 = vcmp.eq.f32.partialorder %v616, 0.0
    %v1031 = vand.u32 %v616, 2147483648
    %v1032 = vsel %vm1030, %v1031, %v1029
    %v1033 = vrsqrt.pop %v617
    %v1034 = vmul.f32 %v617, %v1033
    %vm1035 = vcmp.eq.f32.partialorder %v617, inf
    %v1036 = vsel %vm1035, %v617, %v1034
    %vm1037 = vcmp.eq.f32.partialorder %v617, 0.0
    %v1038 = vand.u32 %v617, 2147483648
    %v1039 = vsel %vm1037, %v1038, %v1036
    %v1040 = vrsqrt.pop %v618
    %v1041 = vmul.f32 %v618, %v1040
    %vm1042 = vcmp.eq.f32.partialorder %v618, inf
    %v1043 = vsel %vm1042, %v618, %v1041
    %vm1044 = vcmp.eq.f32.partialorder %v618, 0.0
    %v1045 = vand.u32 %v618, 2147483648
    %v1046 = vsel %vm1044, %v1045, %v1043
    %v1047 = vrsqrt.pop %v619
    %v1048 = vmul.f32 %v619, %v1047
    %vm1049 = vcmp.eq.f32.partialorder %v619, inf
    %v1050 = vsel %vm1049, %v619, %v1048
    %vm1051 = vcmp.eq.f32.partialorder %v619, 0.0
    %v1052 = vand.u32 %v619, 2147483648
    %v1053 = vsel %vm1051, %v1052, %v1050
    %v1054 = vrsqrt.pop %v620
    %v1055 = vmul.f32 %v620, %v1054
    %vm1056 = vcmp.eq.f32.partialorder %v620, inf
    %v1057 = vsel %vm1056, %v620, %v1055
    %vm1058 = vcmp.eq.f32.partialorder %v620, 0.0
    %v1059 = vand.u32 %v620, 2147483648
    %v1060 = vsel %vm1058, %v1059, %v1057
    %v1061 = vrsqrt.pop %v621
    %v1062 = vmul.f32 %v621, %v1061
    %vm1063 = vcmp.eq.f32.partialorder %v621, inf
    %v1064 = vsel %vm1063, %v621, %v1062
    %vm1065 = vcmp.eq.f32.partialorder %v621, 0.0
    %v1066 = vand.u32 %v621, 2147483648
    %v1067 = vsel %vm1065, %v1066, %v1064
    %v1068 = vrsqrt.pop %v622
    %v1069 = vmul.f32 %v622, %v1068
    %vm1070 = vcmp.eq.f32.partialorder %v622, inf
    %v1071 = vsel %vm1070, %v622, %v1069
    %vm1072 = vcmp.eq.f32.partialorder %v622, 0.0
    %v1073 = vand.u32 %v622, 2147483648
    %v1074 = vsel %vm1072, %v1073, %v1071
    %v1075 = vrsqrt.pop %v623
    %v1076 = vmul.f32 %v623, %v1075
    %vm1077 = vcmp.eq.f32.partialorder %v623, inf
    %v1078 = vsel %vm1077, %v623, %v1076
    %vm1079 = vcmp.eq.f32.partialorder %v623, 0.0
    %v1080 = vand.u32 %v623, 2147483648
    %v1081 = vsel %vm1079, %v1080, %v1078
    %v1082 = vrsqrt.pop %v624
    %v1083 = vmul.f32 %v624, %v1082
    %vm1084 = vcmp.eq.f32.partialorder %v624, inf
    %v1085 = vsel %vm1084, %v624, %v1083
    %vm1086 = vcmp.eq.f32.partialorder %v624, 0.0
    %v1087 = vand.u32 %v624, 2147483648
    %v1088 = vsel %vm1086, %v1087, %v1085
    %v1089 = vrsqrt.pop %v625
    %v1090 = vmul.f32 %v625, %v1089
    %vm1091 = vcmp.eq.f32.partialorder %v625, inf
    %v1092 = vsel %vm1091, %v625, %v1090
    %vm1093 = vcmp.eq.f32.partialorder %v625, 0.0
    %v1094 = vand.u32 %v625, 2147483648
    %v1095 = vsel %vm1093, %v1094, %v1092
    %v1096 = vrsqrt.pop %v626
    %v1097 = vmul.f32 %v626, %v1096
    %vm1098 = vcmp.eq.f32.partialorder %v626, inf
    %v1099 = vsel %vm1098, %v626, %v1097
    %vm1100 = vcmp.eq.f32.partialorder %v626, 0.0
    %v1101 = vand.u32 %v626, 2147483648
    %v1102 = vsel %vm1100, %v1101, %v1099
    %v1103 = vrsqrt.pop %v627
    %v1104 = vmul.f32 %v627, %v1103
    %vm1105 = vcmp.eq.f32.partialorder %v627, inf
    %v1106 = vsel %vm1105, %v627, %v1104
    %vm1107 = vcmp.eq.f32.partialorder %v627, 0.0
    %v1108 = vand.u32 %v627, 2147483648
    %v1109 = vsel %vm1107, %v1108, %v1106
    %v1110 = vrsqrt.pop %v628
    %v1111 = vmul.f32 %v628, %v1110
    %vm1112 = vcmp.eq.f32.partialorder %v628, inf
    %v1113 = vsel %vm1112, %v628, %v1111
    %vm1114 = vcmp.eq.f32.partialorder %v628, 0.0
    %v1115 = vand.u32 %v628, 2147483648
    %v1116 = vsel %vm1114, %v1115, %v1113
    %v1117 = vrsqrt.pop %v629
    %v1118 = vmul.f32 %v629, %v1117
    %vm1119 = vcmp.eq.f32.partialorder %v629, inf
    %v1120 = vsel %vm1119, %v629, %v1118
    %vm1121 = vcmp.eq.f32.partialorder %v629, 0.0
    %v1122 = vand.u32 %v629, 2147483648
    %v1123 = vsel %vm1121, %v1122, %v1120
    %v1124 = vrsqrt.pop %v630
    %v1125 = vmul.f32 %v630, %v1124
    %vm1126 = vcmp.eq.f32.partialorder %v630, inf
    %v1127 = vsel %vm1126, %v630, %v1125
    %vm1128 = vcmp.eq.f32.partialorder %v630, 0.0
    %v1129 = vand.u32 %v630, 2147483648
    %v1130 = vsel %vm1128, %v1129, %v1127
    %v1131 = vrsqrt.pop %v631
    %v1132 = vmul.f32 %v631, %v1131
    %vm1133 = vcmp.eq.f32.partialorder %v631, inf
    %v1134 = vsel %vm1133, %v631, %v1132
    %vm1135 = vcmp.eq.f32.partialorder %v631, 0.0
    %v1136 = vand.u32 %v631, 2147483648
    %v1137 = vsel %vm1135, %v1136, %v1134
    %v1138 = vrsqrt.pop %v632
    %v1139 = vmul.f32 %v632, %v1138
    %vm1140 = vcmp.eq.f32.partialorder %v632, inf
    %v1141 = vsel %vm1140, %v632, %v1139
    %vm1142 = vcmp.eq.f32.partialorder %v632, 0.0
    %v1143 = vand.u32 %v632, 2147483648
    %v1144 = vsel %vm1142, %v1143, %v1141
    %v1145 = vrsqrt.pop %v633
    %v1146 = vmul.f32 %v633, %v1145
    %vm1147 = vcmp.eq.f32.partialorder %v633, inf
    %v1148 = vsel %vm1147, %v633, %v1146
    %vm1149 = vcmp.eq.f32.partialorder %v633, 0.0
    %v1150 = vand.u32 %v633, 2147483648
    %v1151 = vsel %vm1149, %v1150, %v1148
    %v1152 = vrsqrt.pop %v634
    %v1153 = vmul.f32 %v634, %v1152
    %vm1154 = vcmp.eq.f32.partialorder %v634, inf
    %v1155 = vsel %vm1154, %v634, %v1153
    %vm1156 = vcmp.eq.f32.partialorder %v634, 0.0
    %v1157 = vand.u32 %v634, 2147483648
    %v1158 = vsel %vm1156, %v1157, %v1155
    %v1159 = vrsqrt.pop %v635
    %v1160 = vmul.f32 %v635, %v1159
    %vm1161 = vcmp.eq.f32.partialorder %v635, inf
    %v1162 = vsel %vm1161, %v635, %v1160
    %vm1163 = vcmp.eq.f32.partialorder %v635, 0.0
    %v1164 = vand.u32 %v635, 2147483648
    %v1165 = vsel %vm1163, %v1164, %v1162
    %v1166 = vrsqrt.pop %v636
    %v1167 = vmul.f32 %v636, %v1166
    %vm1168 = vcmp.eq.f32.partialorder %v636, inf
    %v1169 = vsel %vm1168, %v636, %v1167
    %vm1170 = vcmp.eq.f32.partialorder %v636, 0.0
    %v1171 = vand.u32 %v636, 2147483648
    %v1172 = vsel %vm1170, %v1171, %v1169
    %v1173 = vrsqrt.pop %v637
    %v1174 = vmul.f32 %v637, %v1173
    %vm1175 = vcmp.eq.f32.partialorder %v637, inf
    %v1176 = vsel %vm1175, %v637, %v1174
    %vm1177 = vcmp.eq.f32.partialorder %v637, 0.0
    %v1178 = vand.u32 %v637, 2147483648
    %v1179 = vsel %vm1177, %v1178, %v1176
    %v1180 = vrsqrt.pop %v638
    %v1181 = vmul.f32 %v638, %v1180
    %vm1182 = vcmp.eq.f32.partialorder %v638, inf
    %v1183 = vsel %vm1182, %v638, %v1181
    %vm1184 = vcmp.eq.f32.partialorder %v638, 0.0
    %v1185 = vand.u32 %v638, 2147483648
    %v1186 = vsel %vm1184, %v1185, %v1183
    %v1187 = vrsqrt.pop %v639
    %v1188 = vmul.f32 %v639, %v1187
    %vm1189 = vcmp.eq.f32.partialorder %v639, inf
    %v1190 = vsel %vm1189, %v639, %v1188
    %vm1191 = vcmp.eq.f32.partialorder %v639, 0.0
    %v1192 = vand.u32 %v639, 2147483648
    %v1193 = vsel %vm1191, %v1192, %v1190
    %v1194 = vrsqrt.pop %v640
    %v1195 = vmul.f32 %v640, %v1194
    %vm1196 = vcmp.eq.f32.partialorder %v640, inf
    %v1197 = vsel %vm1196, %v640, %v1195
    %vm1198 = vcmp.eq.f32.partialorder %v640, 0.0
    %v1199 = vand.u32 %v640, 2147483648
    %v1200 = vsel %vm1198, %v1199, %v1197
    %v1201 = vrsqrt.pop %v641
    %v1202 = vmul.f32 %v641, %v1201
    %vm1203 = vcmp.eq.f32.partialorder %v641, inf
    %v1204 = vsel %vm1203, %v641, %v1202
    %vm1205 = vcmp.eq.f32.partialorder %v641, 0.0
    %v1206 = vand.u32 %v641, 2147483648
    %v1207 = vsel %vm1205, %v1206, %v1204
    %v1208 = vrsqrt.pop %v642
    %v1209 = vmul.f32 %v642, %v1208
    %vm1210 = vcmp.eq.f32.partialorder %v642, inf
    %v1211 = vsel %vm1210, %v642, %v1209
    %vm1212 = vcmp.eq.f32.partialorder %v642, 0.0
    %v1213 = vand.u32 %v642, 2147483648
    %v1214 = vsel %vm1212, %v1213, %v1211
    %v1215 = vrsqrt.pop %v643
    %v1216 = vmul.f32 %v643, %v1215
    %vm1217 = vcmp.eq.f32.partialorder %v643, inf
    %v1218 = vsel %vm1217, %v643, %v1216
    %vm1219 = vcmp.eq.f32.partialorder %v643, 0.0
    %v1220 = vand.u32 %v643, 2147483648
    %v1221 = vsel %vm1219, %v1220, %v1218
    %v1222 = vrsqrt.pop %v644
    %v1223 = vmul.f32 %v644, %v1222
    %vm1224 = vcmp.eq.f32.partialorder %v644, inf
    %v1225 = vsel %vm1224, %v644, %v1223
    %vm1226 = vcmp.eq.f32.partialorder %v644, 0.0
    %v1227 = vand.u32 %v644, 2147483648
    %v1228 = vsel %vm1226, %v1227, %v1225
    %v1229 = vrsqrt.pop %v645
    %v1230 = vmul.f32 %v645, %v1229
    %vm1231 = vcmp.eq.f32.partialorder %v645, inf
    %v1232 = vsel %vm1231, %v645, %v1230
    %vm1233 = vcmp.eq.f32.partialorder %v645, 0.0
    %v1234 = vand.u32 %v645, 2147483648
    %v1235 = vsel %vm1233, %v1234, %v1232
    %v1236 = vrsqrt.pop %v646
    %v1237 = vmul.f32 %v646, %v1236
    %vm1238 = vcmp.eq.f32.partialorder %v646, inf
    %v1239 = vsel %vm1238, %v646, %v1237
    %vm1240 = vcmp.eq.f32.partialorder %v646, 0.0
    %v1241 = vand.u32 %v646, 2147483648
    %v1242 = vsel %vm1240, %v1241, %v1239
    %v1243 = vrsqrt.pop %v647
    %v1244 = vmul.f32 %v647, %v1243
    %vm1245 = vcmp.eq.f32.partialorder %v647, inf
    %v1246 = vsel %vm1245, %v647, %v1244
    %vm1247 = vcmp.eq.f32.partialorder %v647, 0.0
    %v1248 = vand.u32 %v647, 2147483648
    %v1249 = vsel %vm1247, %v1248, %v1246
    %v1250 = vrsqrt.pop %v648
    %v1251 = vmul.f32 %v648, %v1250
    %vm1252 = vcmp.eq.f32.partialorder %v648, inf
    %v1253 = vsel %vm1252, %v648, %v1251
    %vm1254 = vcmp.eq.f32.partialorder %v648, 0.0
    %v1255 = vand.u32 %v648, 2147483648
    %v1256 = vsel %vm1254, %v1255, %v1253
    %v1257 = vrsqrt.pop %v649
    %v1258 = vmul.f32 %v649, %v1257
    %vm1259 = vcmp.eq.f32.partialorder %v649, inf
    %v1260 = vsel %vm1259, %v649, %v1258
    %vm1261 = vcmp.eq.f32.partialorder %v649, 0.0
    %v1262 = vand.u32 %v649, 2147483648
    %v1263 = vsel %vm1261, %v1262, %v1260
    %v1264 = vrsqrt.pop %v650
    %v1265 = vmul.f32 %v650, %v1264
    %vm1266 = vcmp.eq.f32.partialorder %v650, inf
    %v1267 = vsel %vm1266, %v650, %v1265
    %vm1268 = vcmp.eq.f32.partialorder %v650, 0.0
    %v1269 = vand.u32 %v650, 2147483648
    %v1270 = vsel %vm1268, %v1269, %v1267
    %v1271 = vrsqrt.pop %v651
    %v1272 = vmul.f32 %v651, %v1271
    %vm1273 = vcmp.eq.f32.partialorder %v651, inf
    %v1274 = vsel %vm1273, %v651, %v1272
    %vm1275 = vcmp.eq.f32.partialorder %v651, 0.0
    %v1276 = vand.u32 %v651, 2147483648
    %v1277 = vsel %vm1275, %v1276, %v1274
    %v1278 = vrsqrt.pop %v652
    %v1279 = vmul.f32 %v652, %v1278
    %vm1280 = vcmp.eq.f32.partialorder %v652, inf
    %v1281 = vsel %vm1280, %v652, %v1279
    %vm1282 = vcmp.eq.f32.partialorder %v652, 0.0
    %v1283 = vand.u32 %v652, 2147483648
    %v1284 = vsel %vm1282, %v1283, %v1281
    %v1285 = vrsqrt.pop %v653
    %v1286 = vmul.f32 %v653, %v1285
    %vm1287 = vcmp.eq.f32.partialorder %v653, inf
    %v1288 = vsel %vm1287, %v653, %v1286
    %vm1289 = vcmp.eq.f32.partialorder %v653, 0.0
    %v1290 = vand.u32 %v653, 2147483648
    %v1291 = vsel %vm1289, %v1290, %v1288
    %v1292 = vrsqrt.pop %v654
    %v1293 = vmul.f32 %v654, %v1292
    %vm1294 = vcmp.eq.f32.partialorder %v654, inf
    %v1295 = vsel %vm1294, %v654, %v1293
    %vm1296 = vcmp.eq.f32.partialorder %v654, 0.0
    %v1297 = vand.u32 %v654, 2147483648
    %v1298 = vsel %vm1296, %v1297, %v1295
    %v1299 = vrsqrt.pop %v655
    %v1300 = vmul.f32 %v655, %v1299
    %vm1301 = vcmp.eq.f32.partialorder %v655, inf
    %v1302 = vsel %vm1301, %v655, %v1300
    %vm1303 = vcmp.eq.f32.partialorder %v655, 0.0
    %v1304 = vand.u32 %v655, 2147483648
    %v1305 = vsel %vm1303, %v1304, %v1302
    %v1306 = vrsqrt.pop %v656
    %v1307 = vmul.f32 %v656, %v1306
    %vm1308 = vcmp.eq.f32.partialorder %v656, inf
    %v1309 = vsel %vm1308, %v656, %v1307
    %vm1310 = vcmp.eq.f32.partialorder %v656, 0.0
    %v1311 = vand.u32 %v656, 2147483648
    %v1312 = vsel %vm1310, %v1311, %v1309
    %v1313 = vrsqrt.pop %v657
    %v1314 = vmul.f32 %v657, %v1313
    %vm1315 = vcmp.eq.f32.partialorder %v657, inf
    %v1316 = vsel %vm1315, %v657, %v1314
    %vm1317 = vcmp.eq.f32.partialorder %v657, 0.0
    %v1318 = vand.u32 %v657, 2147483648
    %v1319 = vsel %vm1317, %v1318, %v1316
    %v1320 = vrsqrt.pop %v658
    %v1321 = vmul.f32 %v658, %v1320
    %vm1322 = vcmp.eq.f32.partialorder %v658, inf
    %v1323 = vsel %vm1322, %v658, %v1321
    %vm1324 = vcmp.eq.f32.partialorder %v658, 0.0
    %v1325 = vand.u32 %v658, 2147483648
    %v1326 = vsel %vm1324, %v1325, %v1323
    %v1327 = vrsqrt.pop %v659
    %v1328 = vmul.f32 %v659, %v1327
    %vm1329 = vcmp.eq.f32.partialorder %v659, inf
    %v1330 = vsel %vm1329, %v659, %v1328
    %vm1331 = vcmp.eq.f32.partialorder %v659, 0.0
    %v1332 = vand.u32 %v659, 2147483648
    %v1333 = vsel %vm1331, %v1332, %v1330
    %v1334 = vrsqrt.pop %v660
    %v1335 = vmul.f32 %v660, %v1334
    %vm1336 = vcmp.eq.f32.partialorder %v660, inf
    %v1337 = vsel %vm1336, %v660, %v1335
    %vm1338 = vcmp.eq.f32.partialorder %v660, 0.0
    %v1339 = vand.u32 %v660, 2147483648
    %v1340 = vsel %vm1338, %v1339, %v1337
    %v1341 = vrsqrt.pop %v661
    %v1342 = vmul.f32 %v661, %v1341
    %vm1343 = vcmp.eq.f32.partialorder %v661, inf
    %v1344 = vsel %vm1343, %v661, %v1342
    %vm1345 = vcmp.eq.f32.partialorder %v661, 0.0
    %v1346 = vand.u32 %v661, 2147483648
    %v1347 = vsel %vm1345, %v1346, %v1344
    %v1348 = vrsqrt.pop %v662
    %v1349 = vmul.f32 %v662, %v1348
    %vm1350 = vcmp.eq.f32.partialorder %v662, inf
    %v1351 = vsel %vm1350, %v662, %v1349
    %vm1352 = vcmp.eq.f32.partialorder %v662, 0.0
    %v1353 = vand.u32 %v662, 2147483648
    %v1354 = vsel %vm1352, %v1353, %v1351
    %v1355 = vrsqrt.pop %v663
    %v1356 = vmul.f32 %v663, %v1355
    %vm1357 = vcmp.eq.f32.partialorder %v663, inf
    %v1358 = vsel %vm1357, %v663, %v1356
    %vm1359 = vcmp.eq.f32.partialorder %v663, 0.0
    %v1360 = vand.u32 %v663, 2147483648
    %v1361 = vsel %vm1359, %v1360, %v1358
    %v1362 = vrsqrt.pop %v664
    %v1363 = vmul.f32 %v664, %v1362
    %vm1364 = vcmp.eq.f32.partialorder %v664, inf
    %v1365 = vsel %vm1364, %v664, %v1363
    %vm1366 = vcmp.eq.f32.partialorder %v664, 0.0
    %v1367 = vand.u32 %v664, 2147483648
    %v1368 = vsel %vm1366, %v1367, %v1365
    %v1369 = vrsqrt.pop %v665
    %v1370 = vmul.f32 %v665, %v1369
    %vm1371 = vcmp.eq.f32.partialorder %v665, inf
    %v1372 = vsel %vm1371, %v665, %v1370
    %vm1373 = vcmp.eq.f32.partialorder %v665, 0.0
    %v1374 = vand.u32 %v665, 2147483648
    %v1375 = vsel %vm1373, %v1374, %v1372
    %v1376 = vrsqrt.pop %v666
    %v1377 = vmul.f32 %v666, %v1376
    %vm1378 = vcmp.eq.f32.partialorder %v666, inf
    %v1379 = vsel %vm1378, %v666, %v1377
    %vm1380 = vcmp.eq.f32.partialorder %v666, 0.0
    %v1381 = vand.u32 %v666, 2147483648
    %v1382 = vsel %vm1380, %v1381, %v1379
    %v1383 = vrsqrt.pop %v667
    %v1384 = vmul.f32 %v667, %v1383
    %vm1385 = vcmp.eq.f32.partialorder %v667, inf
    %v1386 = vsel %vm1385, %v667, %v1384
    %vm1387 = vcmp.eq.f32.partialorder %v667, 0.0
    %v1388 = vand.u32 %v667, 2147483648
    %v1389 = vsel %vm1387, %v1388, %v1386
    %v1390 = vrsqrt.pop %v668
    %v1391 = vmul.f32 %v668, %v1390
    %vm1392 = vcmp.eq.f32.partialorder %v668, inf
    %v1393 = vsel %vm1392, %v668, %v1391
    %vm1394 = vcmp.eq.f32.partialorder %v668, 0.0
    %v1395 = vand.u32 %v668, 2147483648
    %v1396 = vsel %vm1394, %v1395, %v1393
    %v1397 = vrsqrt.pop %v669
    %v1398 = vmul.f32 %v669, %v1397
    %vm1399 = vcmp.eq.f32.partialorder %v669, inf
    %v1400 = vsel %vm1399, %v669, %v1398
    %vm1401 = vcmp.eq.f32.partialorder %v669, 0.0
    %v1402 = vand.u32 %v669, 2147483648
    %v1403 = vsel %vm1401, %v1402, %v1400
    %v1404 = vrsqrt.pop %v670
    %v1405 = vmul.f32 %v670, %v1404
    %vm1406 = vcmp.eq.f32.partialorder %v670, inf
    %v1407 = vsel %vm1406, %v670, %v1405
    %vm1408 = vcmp.eq.f32.partialorder %v670, 0.0
    %v1409 = vand.u32 %v670, 2147483648
    %v1410 = vsel %vm1408, %v1409, %v1407
    %v1411 = vrsqrt.pop %v671
    %v1412 = vmul.f32 %v671, %v1411
    %vm1413 = vcmp.eq.f32.partialorder %v671, inf
    %v1414 = vsel %vm1413, %v671, %v1412
    %vm1415 = vcmp.eq.f32.partialorder %v671, 0.0
    %v1416 = vand.u32 %v671, 2147483648
    %v1417 = vsel %vm1415, %v1416, %v1414
    %v1418 = vrsqrt.pop %v672
    %v1419 = vmul.f32 %v672, %v1418
    %vm1420 = vcmp.eq.f32.partialorder %v672, inf
    %v1421 = vsel %vm1420, %v672, %v1419
    %vm1422 = vcmp.eq.f32.partialorder %v672, 0.0
    %v1423 = vand.u32 %v672, 2147483648
    %v1424 = vsel %vm1422, %v1423, %v1421
    %v1425 = vrsqrt.pop %v673
    %v1426 = vmul.f32 %v673, %v1425
    %vm1427 = vcmp.eq.f32.partialorder %v673, inf
    %v1428 = vsel %vm1427, %v673, %v1426
    %vm1429 = vcmp.eq.f32.partialorder %v673, 0.0
    %v1430 = vand.u32 %v673, 2147483648
    %v1431 = vsel %vm1429, %v1430, %v1428
    %v1432 = vrsqrt.pop %v674
    %v1433 = vmul.f32 %v674, %v1432
    %vm1434 = vcmp.eq.f32.partialorder %v674, inf
    %v1435 = vsel %vm1434, %v674, %v1433
    %vm1436 = vcmp.eq.f32.partialorder %v674, 0.0
    %v1437 = vand.u32 %v674, 2147483648
    %v1438 = vsel %vm1436, %v1437, %v1435
    %v1439 = vrsqrt.pop %v675
    %v1440 = vmul.f32 %v675, %v1439
    %vm1441 = vcmp.eq.f32.partialorder %v675, inf
    %v1442 = vsel %vm1441, %v675, %v1440
    %vm1443 = vcmp.eq.f32.partialorder %v675, 0.0
    %v1444 = vand.u32 %v675, 2147483648
    %v1445 = vsel %vm1443, %v1444, %v1442
    %v1446 = vrsqrt.pop %v676
    %v1447 = vmul.f32 %v676, %v1446
    %vm1448 = vcmp.eq.f32.partialorder %v676, inf
    %v1449 = vsel %vm1448, %v676, %v1447
    %vm1450 = vcmp.eq.f32.partialorder %v676, 0.0
    %v1451 = vand.u32 %v676, 2147483648
    %v1452 = vsel %vm1450, %v1451, %v1449
    %v1453 = vrsqrt.pop %v677
    %v1454 = vmul.f32 %v677, %v1453
    %vm1455 = vcmp.eq.f32.partialorder %v677, inf
    %v1456 = vsel %vm1455, %v677, %v1454
    %vm1457 = vcmp.eq.f32.partialorder %v677, 0.0
    %v1458 = vand.u32 %v677, 2147483648
    %v1459 = vsel %vm1457, %v1458, %v1456
    %v1460 = vrsqrt.pop %v678
    %v1461 = vmul.f32 %v678, %v1460
    %vm1462 = vcmp.eq.f32.partialorder %v678, inf
    %v1463 = vsel %vm1462, %v678, %v1461
    %vm1464 = vcmp.eq.f32.partialorder %v678, 0.0
    %v1465 = vand.u32 %v678, 2147483648
    %v1466 = vsel %vm1464, %v1465, %v1463
    %v1467 = vrsqrt.pop %v679
    %v1468 = vmul.f32 %v679, %v1467
    %vm1469 = vcmp.eq.f32.partialorder %v679, inf
    %v1470 = vsel %vm1469, %v679, %v1468
    %vm1471 = vcmp.eq.f32.partialorder %v679, 0.0
    %v1472 = vand.u32 %v679, 2147483648
    %v1473 = vsel %vm1471, %v1472, %v1470
    %v1474 = vrsqrt.pop %v680
    %v1475 = vmul.f32 %v680, %v1474
    %vm1476 = vcmp.eq.f32.partialorder %v680, inf
    %v1477 = vsel %vm1476, %v680, %v1475
    %vm1478 = vcmp.eq.f32.partialorder %v680, 0.0
    %v1479 = vand.u32 %v680, 2147483648
    %v1480 = vsel %vm1478, %v1479, %v1477
    %v1481 = vrsqrt.pop %v681
    %v1482 = vmul.f32 %v681, %v1481
    %vm1483 = vcmp.eq.f32.partialorder %v681, inf
    %v1484 = vsel %vm1483, %v681, %v1482
    %vm1485 = vcmp.eq.f32.partialorder %v681, 0.0
    %v1486 = vand.u32 %v681, 2147483648
    %v1487 = vsel %vm1485, %v1486, %v1484
    %v1488 = vrsqrt.pop %v682
    %v1489 = vmul.f32 %v682, %v1488
    %vm1490 = vcmp.eq.f32.partialorder %v682, inf
    %v1491 = vsel %vm1490, %v682, %v1489
    %vm1492 = vcmp.eq.f32.partialorder %v682, 0.0
    %v1493 = vand.u32 %v682, 2147483648
    %v1494 = vsel %vm1492, %v1493, %v1491
    %v1495 = vrsqrt.pop %v683
    %v1496 = vmul.f32 %v683, %v1495
    %vm1497 = vcmp.eq.f32.partialorder %v683, inf
    %v1498 = vsel %vm1497, %v683, %v1496
    %vm1499 = vcmp.eq.f32.partialorder %v683, 0.0
    %v1500 = vand.u32 %v683, 2147483648
    %v1501 = vsel %vm1499, %v1500, %v1498
    %v1502 = vrsqrt.pop %v684
    %v1503 = vmul.f32 %v684, %v1502
    %vm1504 = vcmp.eq.f32.partialorder %v684, inf
    %v1505 = vsel %vm1504, %v684, %v1503
    %vm1506 = vcmp.eq.f32.partialorder %v684, 0.0
    %v1507 = vand.u32 %v684, 2147483648
    %v1508 = vsel %vm1506, %v1507, %v1505
    %v1509 = vrsqrt.pop %v685
    %v1510 = vmul.f32 %v685, %v1509
    %vm1511 = vcmp.eq.f32.partialorder %v685, inf
    %v1512 = vsel %vm1511, %v685, %v1510
    %vm1513 = vcmp.eq.f32.partialorder %v685, 0.0
    %v1514 = vand.u32 %v685, 2147483648
    %v1515 = vsel %vm1513, %v1514, %v1512
    %v1516 = vrsqrt.pop %v686
    %v1517 = vmul.f32 %v686, %v1516
    %vm1518 = vcmp.eq.f32.partialorder %v686, inf
    %v1519 = vsel %vm1518, %v686, %v1517
    %vm1520 = vcmp.eq.f32.partialorder %v686, 0.0
    %v1521 = vand.u32 %v686, 2147483648
    %v1522 = vsel %vm1520, %v1521, %v1519
    %v1523 = vrsqrt.pop %v687
    %v1524 = vmul.f32 %v687, %v1523
    %vm1525 = vcmp.eq.f32.partialorder %v687, inf
    %v1526 = vsel %vm1525, %v687, %v1524
    %vm1527 = vcmp.eq.f32.partialorder %v687, 0.0
    %v1528 = vand.u32 %v687, 2147483648
    %v1529 = vsel %vm1527, %v1528, %v1526
    %v1530 = vrsqrt.pop %v688
    %v1531 = vmul.f32 %v688, %v1530
    %vm1532 = vcmp.eq.f32.partialorder %v688, inf
    %v1533 = vsel %vm1532, %v688, %v1531
    %vm1534 = vcmp.eq.f32.partialorder %v688, 0.0
    %v1535 = vand.u32 %v688, 2147483648
    %v1536 = vsel %vm1534, %v1535, %v1533
    %v1537 = vrsqrt.pop %v689
    %v1538 = vmul.f32 %v689, %v1537
    %vm1539 = vcmp.eq.f32.partialorder %v689, inf
    %v1540 = vsel %vm1539, %v689, %v1538
    %vm1541 = vcmp.eq.f32.partialorder %v689, 0.0
    %v1542 = vand.u32 %v689, 2147483648
    %v1543 = vsel %vm1541, %v1542, %v1540
    %v1544 = vrsqrt.pop %v690
    %v1545 = vmul.f32 %v690, %v1544
    %vm1546 = vcmp.eq.f32.partialorder %v690, inf
    %v1547 = vsel %vm1546, %v690, %v1545
    %vm1548 = vcmp.eq.f32.partialorder %v690, 0.0
    %v1549 = vand.u32 %v690, 2147483648
    %v1550 = vsel %vm1548, %v1549, %v1547
    %v1551 = vrsqrt.pop %v691
    %v1552 = vmul.f32 %v691, %v1551
    %vm1553 = vcmp.eq.f32.partialorder %v691, inf
    %v1554 = vsel %vm1553, %v691, %v1552
    %vm1555 = vcmp.eq.f32.partialorder %v691, 0.0
    %v1556 = vand.u32 %v691, 2147483648
    %v1557 = vsel %vm1555, %v1556, %v1554
    %v1558 = vrsqrt.pop %v692
    %v1559 = vmul.f32 %v692, %v1558
    %vm1560 = vcmp.eq.f32.partialorder %v692, inf
    %v1561 = vsel %vm1560, %v692, %v1559
    %vm1562 = vcmp.eq.f32.partialorder %v692, 0.0
    %v1563 = vand.u32 %v692, 2147483648
    %v1564 = vsel %vm1562, %v1563, %v1561
    %v1565 = vrsqrt.pop %v693
    %v1566 = vmul.f32 %v693, %v1565
    %vm1567 = vcmp.eq.f32.partialorder %v693, inf
    %v1568 = vsel %vm1567, %v693, %v1566
    %vm1569 = vcmp.eq.f32.partialorder %v693, 0.0
    %v1570 = vand.u32 %v693, 2147483648
    %v1571 = vsel %vm1569, %v1570, %v1568
    %v1572 = vrsqrt.pop %v694
    %v1573 = vmul.f32 %v694, %v1572
    %vm1574 = vcmp.eq.f32.partialorder %v694, inf
    %v1575 = vsel %vm1574, %v694, %v1573
    %vm1576 = vcmp.eq.f32.partialorder %v694, 0.0
    %v1577 = vand.u32 %v694, 2147483648
    %v1578 = vsel %vm1576, %v1577, %v1575
    %v1579 = vrsqrt.pop %v695
    %v1580 = vmul.f32 %v695, %v1579
    %vm1581 = vcmp.eq.f32.partialorder %v695, inf
    %v1582 = vsel %vm1581, %v695, %v1580
    %vm1583 = vcmp.eq.f32.partialorder %v695, 0.0
    %v1584 = vand.u32 %v695, 2147483648
    %v1585 = vsel %vm1583, %v1584, %v1582
    %v1586 = vrsqrt.pop %v696
    %v1587 = vmul.f32 %v696, %v1586
    %vm1588 = vcmp.eq.f32.partialorder %v696, inf
    %v1589 = vsel %vm1588, %v696, %v1587
    %vm1590 = vcmp.eq.f32.partialorder %v696, 0.0
    %v1591 = vand.u32 %v696, 2147483648
    %v1592 = vsel %vm1590, %v1591, %v1589
    %v1593 = vld [vmem:[#allocation7] sm:$0x1]
    %v1594 = vadd.f32 %v703, %v710
    %v1595 = vadd.f32 %v1594, %v717
    %v1596 = vadd.f32 %v1595, %v724
    %v1597 = vadd.f32 %v1596, %v731
    %v1598 = vadd.f32 %v1597, %v738
    %v1599 = vadd.f32 %v1598, %v745
    %v1600 = vadd.f32 %v1599, %v752
    %v1601 = vadd.f32 %v1600, %v759
    %v1602 = vadd.f32 %v1601, %v766
    %v1603 = vadd.f32 %v1602, %v773
    %v1604 = vadd.f32 %v1603, %v780
    %v1605 = vadd.f32 %v1604, %v787
    %v1606 = vadd.f32 %v1605, %v794
    %v1607 = vadd.f32 %v1606, %v801
    %v1608 = vadd.f32 %v1607, %v808
    %v1609 = vadd.f32 %v1608, %v815
    %v1610 = vadd.f32 %v1609, %v822
    %v1611 = vadd.f32 %v1610, %v829
    %v1612 = vadd.f32 %v1611, %v836
    %v1613 = vadd.f32 %v1612, %v843
    %v1614 = vadd.f32 %v1613, %v850
    %v1615 = vadd.f32 %v1614, %v857
    %v1616 = vadd.f32 %v1615, %v864
    %v1617 = vadd.f32 %v1616, %v871
    %v1618 = vadd.f32 %v1617, %v878
    %v1619 = vadd.f32 %v1618, %v885
    %v1620 = vadd.f32 %v1619, %v892
    %v1621 = vadd.f32 %v1620, %v899
    %v1622 = vadd.f32 %v1621, %v906
    %v1623 = vadd.f32 %v1622, %v913
    %v1624 = vadd.f32 %v1623, %v920
    %v1625 = vadd.f32 %v1624, %v927
    %v1626 = vadd.f32 %v1625, %v934
    %v1627 = vadd.f32 %v1626, %v941
    %v1628 = vadd.f32 %v1627, %v948
    %v1629 = vadd.f32 %v1628, %v955
    %v1630 = vadd.f32 %v1629, %v962
    %v1631 = vadd.f32 %v1630, %v969
    %v1632 = vadd.f32 %v1631, %v976
    %v1633 = vadd.f32 %v1632, %v983
    %v1634 = vadd.f32 %v1633, %v990
    %v1635 = vadd.f32 %v1634, %v997
    %v1636 = vadd.f32 %v1635, %v1004
    %v1637 = vadd.f32 %v1636, %v1011
    %v1638 = vadd.f32 %v1637, %v1018
    %v1639 = vadd.f32 %v1638, %v1025
    %v1640 = vadd.f32 %v1639, %v1032
    %v1641 = vadd.f32 %v1640, %v1039
    %v1642 = vadd.f32 %v1641, %v1046
    %v1643 = vadd.f32 %v1642, %v1053
    %v1644 = vadd.f32 %v1643, %v1060
    %v1645 = vadd.f32 %v1644, %v1067
    %v1646 = vadd.f32 %v1645, %v1074
    %v1647 = vadd.f32 %v1646, %v1081
    %v1648 = vadd.f32 %v1647, %v1088
    %v1649 = vadd.f32 %v1648, %v1095
    %v1650 = vadd.f32 %v1649, %v1102
    %v1651 = vadd.f32 %v1650, %v1109
    %v1652 = vadd.f32 %v1651, %v1116
    %v1653 = vadd.f32 %v1652, %v1123
    %v1654 = vadd.f32 %v1653, %v1130
    %v1655 = vadd.f32 %v1654, %v1137
    %v1656 = vadd.f32 %v1655, %v1144
    %v1657 = vadd.f32 %v1656, %v1151
    %v1658 = vadd.f32 %v1657, %v1158
    %v1659 = vadd.f32 %v1658, %v1165
    %v1660 = vadd.f32 %v1659, %v1172
    %v1661 = vadd.f32 %v1660, %v1179
    %v1662 = vadd.f32 %v1661, %v1186
    %v1663 = vadd.f32 %v1662, %v1193
    %v1664 = vadd.f32 %v1663, %v1200
    %v1665 = vadd.f32 %v1664, %v1207
    %v1666 = vadd.f32 %v1665, %v1214
    %v1667 = vadd.f32 %v1666, %v1221
    %v1668 = vadd.f32 %v1667, %v1228
    %v1669 = vadd.f32 %v1668, %v1235
    %v1670 = vadd.f32 %v1669, %v1242
    %v1671 = vadd.f32 %v1670, %v1249
    %v1672 = vadd.f32 %v1671, %v1256
    %v1673 = vadd.f32 %v1672, %v1263
    %v1674 = vadd.f32 %v1673, %v1270
    %v1675 = vadd.f32 %v1674, %v1277
    %v1676 = vadd.f32 %v1675, %v1284
    %v1677 = vadd.f32 %v1676, %v1291
    %v1678 = vadd.f32 %v1677, %v1298
    %v1679 = vadd.f32 %v1678, %v1305
    %v1680 = vadd.f32 %v1679, %v1312
    %v1681 = vadd.f32 %v1680, %v1319
    %v1682 = vadd.f32 %v1681, %v1326
    %v1683 = vadd.f32 %v1682, %v1333
    %v1684 = vadd.f32 %v1683, %v1340
    %v1685 = vadd.f32 %v1684, %v1347
    %v1686 = vadd.f32 %v1685, %v1354
    %v1687 = vadd.f32 %v1686, %v1361
    %v1688 = vadd.f32 %v1687, %v1368
    %v1689 = vadd.f32 %v1688, %v1375
    %v1690 = vadd.f32 %v1689, %v1382
    %v1691 = vadd.f32 %v1690, %v1389
    %v1692 = vadd.f32 %v1691, %v1396
    %v1693 = vadd.f32 %v1692, %v1403
    %v1694 = vadd.f32 %v1693, %v1410
    %v1695 = vadd.f32 %v1694, %v1417
    %v1696 = vadd.f32 %v1695, %v1424
    %v1697 = vadd.f32 %v1696, %v1431
    %v1698 = vadd.f32 %v1697, %v1438
    %v1699 = vadd.f32 %v1698, %v1445
    %v1700 = vadd.f32 %v1699, %v1452
    %v1701 = vadd.f32 %v1700, %v1459
    %v1702 = vadd.f32 %v1701, %v1466
    %v1703 = vadd.f32 %v1702, %v1473
    %v1704 = vadd.f32 %v1703, %v1480
    %v1705 = vadd.f32 %v1704, %v1487
    %v1706 = vadd.f32 %v1705, %v1494
    %v1707 = vadd.f32 %v1706, %v1501
    %v1708 = vadd.f32 %v1707, %v1508
    %v1709 = vadd.f32 %v1708, %v1515
    %v1710 = vadd.f32 %v1709, %v1522
    %v1711 = vadd.f32 %v1710, %v1529
    %v1712 = vadd.f32 %v1711, %v1536
    %v1713 = vadd.f32 %v1712, %v1543
    %v1714 = vadd.f32 %v1713, %v1550
    %v1715 = vadd.f32 %v1714, %v1557
    %v1716 = vadd.f32 %v1715, %v1564
    %v1717 = vadd.f32 %v1716, %v1571
    %v1718 = vadd.f32 %v1717, %v1578
    %v1719 = vadd.f32 %v1718, %v1585
    %v1720 = vadd.f32 %v1719, %v1592
    %v1721 = vrot.slane %v1720, 4
    %v1722 = vadd.f32 %v1720, %v1721
    %v1723 = vrot.slane %v1722, 2
    %v1724 = vadd.f32 %v1722, %v1723
    %v1725 = vrot.slane %v1724, 1
    %v1726 = vadd.f32 %v1724, %v1725
    %v1727 = vadd.f32 %v1593, %v1726
    %1728 = vst [vmem:[#allocation7] sm:$0x1] %v1727
    // Predicated region
    $region22: #{tpu_custom_call.1} parent=1 // pred_check
      _
    $region23: #{tpu_custom_call.1} parent=1 // pred_check_branch
      %1730 = sbr.rel (0) target = $region25
    $region24: #{tpu_custom_call.1} parent=1 // pred_region
      %s1732 = ssub.s32 16, 16
      %1733 = vsyncadd [#allocation4], %s1732
      %s1735 = sshll.u32 [#allocation7], 4
      %s1736 = int_to_ptr.vmem [resolvable:$true] %s1735
      %1738 = dma.vmem_to_hbm [thread:$0]  %s1736, 16, %s2, [#allocation4]
    $region25: #{tpu_custom_call.1} parent=1 // pred_fallthru
      _
    // Predicated region
    $region26: #{tpu_custom_call.1} parent=1 // pred_check
      _
    $region27: #{tpu_custom_call.1} parent=1 // pred_check_branch
      %1740 = sbr.rel (0) target = $region29
    $region28: #{tpu_custom_call.1} parent=1 // pred_region
      %1741 = dma.done [#allocation4], 16
    $region29: #{tpu_custom_call.1} parent=1 // pred_fallthru
      _
    %1742 = vsyncpa [#allocation3], 1
    %1743 = vsyncpa [#allocation6], 1
    %1744 = vsyncpa [#allocation4], 1

</llo_original>
